<compile_context>
chip_gen: v6e
topology: v6e:2x2x1
jax: 0.10.0
libtpu: 0.0.40
codegen_flags: <defaults>
</compile_context>

<pallas_src>
import functools

import jax
import jax.numpy as jnp
from jax.experimental import pallas as pl
from jax.experimental.pallas import tpu as pltpu

LANE = 128
ROW_ALIGN = 16            # bf16 activations -> 16-row sublane alignment
NEG_BIG = -1e30           # effectively -inf for padded logit columns, NaN-safe


def _round_up(n, m):
    return ((n + m - 1) // m) * m


# --------------------------------------------------------------------------- #
# Kernel
# --------------------------------------------------------------------------- #
def _mlp_kernel(x_ref,
                w1_ref, b1_ref,
                w2_ref, b2_ref,
                w3_ref, b3_ref,
                w4_ref, b4_ref,
                w5_ref, b5_ref,
                out_ref):
    # In-kernel cast f32 -> bf16 (VPU slot, hidden under the DMA).
    h = x_ref[...].astype(jnp.bfloat16)

    def layer(h_bf16, w_ref, b_ref):
        z = jnp.dot(h_bf16, w_ref[...], preferred_element_type=jnp.float32)
        z = z + b_ref[...]                                   # f32 bias add
        return jnp.maximum(z, 0.0).astype(jnp.bfloat16)      # ReLU, recast for MXU

    h = layer(h, w1_ref, b1_ref)   # fc1 + relu   (drop1 = identity, eval mode)
    h = layer(h, w2_ref, b2_ref)   # fc2 + relu
    h = layer(h, w3_ref, b3_ref)   # fc3 + relu
    h = layer(h, w4_ref, b4_ref)   # fc4 + relu

    # Output layer, padded to 128 lanes; padded cols carry a -1e30 bias so they
    # never win the max and exp() underflows to exactly 0 in the sum.
    logits = jnp.dot(h, w5_ref[...], preferred_element_type=jnp.float32) + b5_ref[...]

    # LogSoftmax over features (dim=1), numerically stable, f32 throughout.
    m = jnp.max(logits, axis=1, keepdims=True)
    shifted = logits - m
    lse = jnp.log(jnp.sum(jnp.exp(shifted), axis=1, keepdims=True))
    out_ref[...] = (shifted - lse).astype(out_ref.dtype)


# --------------------------------------------------------------------------- #
# One-time parameter preparation (hoisted out of the hot path)
# --------------------------------------------------------------------------- #
def prepare_params(params):
    """Cast to bf16 and zero-pad every layer width up to a multiple of 128.

    params: list of (W(in, out) f32, b(out,) f32).
    Returns a flat tuple (w1, b1, ..., w5, b5) of kernel-ready operands.
    Padded weight rows/cols are zero; hidden padded biases are zero (so padded
    activations are exactly 0 after ReLU); the final layer's padded bias
    columns are NEG_BIG so padded logits never affect the log-softmax.
    """
    n_layers = len(params)
    prev_pad = params[0][0].shape[0]          # input dim: block covers it fully
    flat = []
    for li, (w, b) in enumerate(params):
        d_in, d_out = w.shape
        out_pad = _round_up(d_out, LANE)
        w_k = jnp.zeros((prev_pad, out_pad), jnp.bfloat16)
        w_k = w_k.at[:d_in, :d_out].set(w.astype(jnp.bfloat16))
        if li == n_layers - 1:
            b_k = jnp.full((1, out_pad), NEG_BIG, jnp.float32)
        else:
            b_k = jnp.zeros((1, out_pad), jnp.float32)
        b_k = b_k.at[0, :d_out].set(b.astype(jnp.float32))
        flat += [w_k, b_k]
        prev_pad = out_pad
    return tuple(flat)


# --------------------------------------------------------------------------- #
# Jitted forward
# --------------------------------------------------------------------------- #
@functools.partial(jax.jit, static_argnames=("out_size",))
def advanced_net_forward(x, prepared, *, out_size):
    """x: (B, input_size) f32. prepared: output of prepare_params()."""
    B, in_size = x.shape
    out_pad = prepared[-1].shape[1]

    # Batch tile: multiple of 16 (bf16 rows), big enough to fill the MXU M dim,
    # and sized so batches >= 32 rows get >=2 "parallel" grid steps (v7x 2 TCs).
    if B <= ROW_ALIGN:
        tb = ROW_ALIGN
    else:
        tb = min(1024, max(ROW_ALIGN, _round_up(pl.cdiv(B, 2), ROW_ALIGN)))
    grid = (pl.cdiv(B, tb),)   # ragged last block clipped by Pallas; no jnp.pad

    # --- specs ---------------------------------------------------------------
    in_specs = [pl.BlockSpec((tb, in_size), lambda i: (i, 0))]
    for a in prepared:
        # Constant index_map -> DMA'd into VMEM once, reused across batch tiles.
        in_specs.append(pl.BlockSpec(a.shape, lambda i: (0, 0)))
    out_specs = pl.BlockSpec((tb, out_pad), lambda i: (i, 0))

    # --- cost estimate + tight VMEM budget ------------------------------------
    flops = 0
    resident_bytes = 0
    for a in prepared:
        resident_bytes += int(a.size) * a.dtype.itemsize
    for w in prepared[0::2]:
        flops += 2 * B * int(w.shape[0]) * int(w.shape[1])
    transcendentals = B * out_pad
    bytes_accessed = x.size * 4 + B * out_pad * 4 + resident_bytes

    stream_bytes = 2 * (tb * in_size * 4 + tb * out_pad * 4)  # dbl-buffered x/out
    act_bytes = 3 * tb * LANE * 4                             # f32 intermediates
    vmem_limit = int(min(64 * 1024 * 1024,
                         max(4 * 1024 * 1024,
                             2 * (resident_bytes + stream_bytes + act_bytes))))

    out_padded = pl.pallas_call(
        _mlp_kernel,
        out_shape=jax.ShapeDtypeStruct((B, out_pad), jnp.float32),
        grid=grid,
        in_specs=in_specs,
        out_specs=out_specs,
        compiler_params=pltpu.CompilerParams(
            dimension_semantics=("parallel",),
            vmem_limit_bytes=vmem_limit),
        cost_estimate=pl.CostEstimate(
            flops=flops,
            transcendentals=transcendentals,
            bytes_accessed=bytes_accessed),
    )(x, *prepared)

    # Feature slice fused under jit (no separate materialized pass).
    return out_padded[:, :out_size]


# --------------------------------------------------------------------------- #
# Init + reference
# --------------------------------------------------------------------------- #
def init_params(key, input_size, output_size):
    """Deterministic init mimicking nn.Linear (uniform(-1/sqrt(fan_in), +...))."""
    dims = [input_size,
            input_size // 2,
            input_size // 4,
            input_size // 8,
            input_size // 16,
            output_size]
    params = []
    for i in range(len(dims) - 1):
        fan_in, fan_out = dims[i], dims[i + 1]
        key, kw, kb = jax.random.split(key, 3)
        bound = 1.0 / jnp.sqrt(fan_in)
        # Stored already transposed relative to PyTorch: (in, out)
        w = jax.random.uniform(kw, (fan_in, fan_out), jnp.float32, -bound, bound)
        b = jax.random.uniform(kb, (fan_out,), jnp.float32, -bound, bound)
        params.append((w, b))
    return params


def _reference_forward(x, params):
    """Pure-JAX reference with the same bf16-operand / f32-accumulate math."""
    h = x.astype(jnp.bfloat16)
    n = len(params)
    for li, (w, b) in enumerate(params):
        z = jnp.dot(h, w.astype(jnp.bfloat16),
                    preferred_element_type=jnp.float32) + b.reshape(1, -1)
        if li < n - 1:
            h = jnp.maximum(z, 0.0).astype(jnp.bfloat16)
        else:
            h = z
    return jax.nn.log_softmax(h, axis=1)


if __name__ == "__main__":
    INPUT_SIZE = 256    # small, divisible by 16 (matches the module's // chain)
    OUTPUT_SIZE = 10
    BATCH = 512         # -> 2 parallel grid steps of a 256-row MXU-filling tile

    key = jax.random.PRNGKey(0)
    key, kx = jax.random.split(key)
    x = jax.random.normal(kx, (BATCH, INPUT_SIZE), jnp.float32)

    params = init_params(key, INPUT_SIZE, OUTPUT_SIZE)
    prepared = jax.block_until_ready(prepare_params(params))  # one-time prep

    out = jax.block_until_ready(
        advanced_net_forward(x, prepared, out_size=OUTPUT_SIZE))

    # Sanity checks.
    assert out.shape == (BATCH, OUTPUT_SIZE)
    row_sums = jnp.sum(jnp.exp(out), axis=1)
    assert bool(jnp.all(jnp.abs(row_sums - 1.0) < 1e-3))

    ref = jax.block_until_ready(_reference_forward(x, params))
    assert bool(jnp.max(jnp.abs(out - ref)) < 1e-1)

    print("KERNEL_OK")
</pallas_src>

<mosaic_0001>
module attributes {stable_mosaic.version = 11 : i64} {
  func.func @_mlp_kernel(%arg0: i32, %arg1: memref<256x256xf32, #tpu.memory_space<vmem>>, %arg2: memref<256x128xbf16, #tpu.memory_space<vmem>>, %arg3: memref<1x128xf32, #tpu.memory_space<vmem>>, %arg4: memref<128x128xbf16, #tpu.memory_space<vmem>>, %arg5: memref<1x128xf32, #tpu.memory_space<vmem>>, %arg6: memref<128x128xbf16, #tpu.memory_space<vmem>>, %arg7: memref<1x128xf32, #tpu.memory_space<vmem>>, %arg8: memref<128x128xbf16, #tpu.memory_space<vmem>>, %arg9: memref<1x128xf32, #tpu.memory_space<vmem>>, %arg10: memref<128x128xbf16, #tpu.memory_space<vmem>>, %arg11: memref<1x128xf32, #tpu.memory_space<vmem>>, %arg12: memref<256x128xf32, #tpu.memory_space<vmem>>) attributes {dimension_semantics = [#tpu.dimension_semantics<parallel>], iteration_bounds = array<i64: 2>, scalar_prefetch = 0 : i64, scratch_operands = 0 : i64, tpu.core_type = #tpu.core_type<tc>, window_params = [{transform_indices = @transform_0, window_bounds = array<i64: 256, 256>}, {pipeline_mode = #tpu.pipeline_mode<synchronous>, transform_indices = @transform_1, window_bounds = array<i64: 256, 128>}, {pipeline_mode = #tpu.pipeline_mode<synchronous>, transform_indices = @transform_2, window_bounds = array<i64: 1, 128>}, {pipeline_mode = #tpu.pipeline_mode<synchronous>, transform_indices = @transform_3, window_bounds = array<i64: 128, 128>}, {pipeline_mode = #tpu.pipeline_mode<synchronous>, transform_indices = @transform_4, window_bounds = array<i64: 1, 128>}, {pipeline_mode = #tpu.pipeline_mode<synchronous>, transform_indices = @transform_5, window_bounds = array<i64: 128, 128>}, {pipeline_mode = #tpu.pipeline_mode<synchronous>, transform_indices = @transform_6, window_bounds = array<i64: 1, 128>}, {pipeline_mode = #tpu.pipeline_mode<synchronous>, transform_indices = @transform_7, window_bounds = array<i64: 128, 128>}, {pipeline_mode = #tpu.pipeline_mode<synchronous>, transform_indices = @transform_8, window_bounds = array<i64: 1, 128>}, {pipeline_mode = #tpu.pipeline_mode<synchronous>, transform_indices = @transform_9, window_bounds = array<i64: 128, 128>}, {pipeline_mode = #tpu.pipeline_mode<synchronous>, transform_indices = @transform_10, window_bounds = array<i64: 1, 128>}, {transform_indices = @transform_11, window_bounds = array<i64: 256, 128>}]} {
    %c0 = arith.constant 0 : index
    %c0_0 = arith.constant 0 : index
    %0 = vector.load %arg1[%c0, %c0_0] : memref<256x256xf32, #tpu.memory_space<vmem>>, vector<256x256xf32>
    %1 = arith.truncf %0 : vector<256x256xf32> to vector<256x256xbf16>
    %c0_1 = arith.constant 0 : index
    %c0_2 = arith.constant 0 : index
    %2 = vector.load %arg2[%c0_1, %c0_2] : memref<256x128xbf16, #tpu.memory_space<vmem>>, vector<256x128xbf16>
    %cst = arith.constant dense<0.000000e+00> : vector<256x128xf32>
    %3 = tpu.matmul %1, %2, %cst {dimension_numbers = #tpu.dot_dimension_numbers<[1], [0], [0], [1], [0, 0, 1, 1], [], []>} : vector<256x256xbf16>, vector<256x128xbf16>, vector<256x128xf32> -> vector<256x128xf32>
    %c0_3 = arith.constant 0 : index
    %c0_4 = arith.constant 0 : index
    %4 = vector.load %arg3[%c0_3, %c0_4] : memref<1x128xf32, #tpu.memory_space<vmem>>, vector<1x128xf32>
    %5 = vector.broadcast %4 : vector<1x128xf32> to vector<256x128xf32>
    %6 = arith.addf %3, %5 : vector<256x128xf32>
    %cst_5 = arith.constant 0.000000e+00 : f32
    %7 = vector.broadcast %cst_5 : f32 to vector<256x128xf32>
    %8 = arith.maximumf %6, %7 : vector<256x128xf32>
    %9 = arith.truncf %8 : vector<256x128xf32> to vector<256x128xbf16>
    %c0_6 = arith.constant 0 : index
    %c0_7 = arith.constant 0 : index
    %10 = vector.load %arg4[%c0_6, %c0_7] : memref<128x128xbf16, #tpu.memory_space<vmem>>, vector<128x128xbf16>
    %cst_8 = arith.constant dense<0.000000e+00> : vector<256x128xf32>
    %11 = tpu.matmul %9, %10, %cst_8 {dimension_numbers = #tpu.dot_dimension_numbers<[1], [0], [0], [1], [0, 0, 1, 1], [], []>} : vector<256x128xbf16>, vector<128x128xbf16>, vector<256x128xf32> -> vector<256x128xf32>
    %c0_9 = arith.constant 0 : index
    %c0_10 = arith.constant 0 : index
    %12 = vector.load %arg5[%c0_9, %c0_10] : memref<1x128xf32, #tpu.memory_space<vmem>>, vector<1x128xf32>
    %13 = vector.broadcast %12 : vector<1x128xf32> to vector<256x128xf32>
    %14 = arith.addf %11, %13 : vector<256x128xf32>
    %cst_11 = arith.constant 0.000000e+00 : f32
    %15 = vector.broadcast %cst_11 : f32 to vector<256x128xf32>
    %16 = arith.maximumf %14, %15 : vector<256x128xf32>
    %17 = arith.truncf %16 : vector<256x128xf32> to vector<256x128xbf16>
    %c0_12 = arith.constant 0 : index
    %c0_13 = arith.constant 0 : index
    %18 = vector.load %arg6[%c0_12, %c0_13] : memref<128x128xbf16, #tpu.memory_space<vmem>>, vector<128x128xbf16>
    %cst_14 = arith.constant dense<0.000000e+00> : vector<256x128xf32>
    %19 = tpu.matmul %17, %18, %cst_14 {dimension_numbers = #tpu.dot_dimension_numbers<[1], [0], [0], [1], [0, 0, 1, 1], [], []>} : vector<256x128xbf16>, vector<128x128xbf16>, vector<256x128xf32> -> vector<256x128xf32>
    %c0_15 = arith.constant 0 : index
    %c0_16 = arith.constant 0 : index
    %20 = vector.load %arg7[%c0_15, %c0_16] : memref<1x128xf32, #tpu.memory_space<vmem>>, vector<1x128xf32>
    %21 = vector.broadcast %20 : vector<1x128xf32> to vector<256x128xf32>
    %22 = arith.addf %19, %21 : vector<256x128xf32>
    %cst_17 = arith.constant 0.000000e+00 : f32
    %23 = vector.broadcast %cst_17 : f32 to vector<256x128xf32>
    %24 = arith.maximumf %22, %23 : vector<256x128xf32>
    %25 = arith.truncf %24 : vector<256x128xf32> to vector<256x128xbf16>
    %c0_18 = arith.constant 0 : index
    %c0_19 = arith.constant 0 : index
    %26 = vector.load %arg8[%c0_18, %c0_19] : memref<128x128xbf16, #tpu.memory_space<vmem>>, vector<128x128xbf16>
    %cst_20 = arith.constant dense<0.000000e+00> : vector<256x128xf32>
    %27 = tpu.matmul %25, %26, %cst_20 {dimension_numbers = #tpu.dot_dimension_numbers<[1], [0], [0], [1], [0, 0, 1, 1], [], []>} : vector<256x128xbf16>, vector<128x128xbf16>, vector<256x128xf32> -> vector<256x128xf32>
    %c0_21 = arith.constant 0 : index
    %c0_22 = arith.constant 0 : index
    %28 = vector.load %arg9[%c0_21, %c0_22] : memref<1x128xf32, #tpu.memory_space<vmem>>, vector<1x128xf32>
    %29 = vector.broadcast %28 : vector<1x128xf32> to vector<256x128xf32>
    %30 = arith.addf %27, %29 : vector<256x128xf32>
    %cst_23 = arith.constant 0.000000e+00 : f32
    %31 = vector.broadcast %cst_23 : f32 to vector<256x128xf32>
    %32 = arith.maximumf %30, %31 : vector<256x128xf32>
    %33 = arith.truncf %32 : vector<256x128xf32> to vector<256x128xbf16>
    %c0_24 = arith.constant 0 : index
    %c0_25 = arith.constant 0 : index
    %34 = vector.load %arg10[%c0_24, %c0_25] : memref<128x128xbf16, #tpu.memory_space<vmem>>, vector<128x128xbf16>
    %cst_26 = arith.constant dense<0.000000e+00> : vector<256x128xf32>
    %35 = tpu.matmul %33, %34, %cst_26 {dimension_numbers = #tpu.dot_dimension_numbers<[1], [0], [0], [1], [0, 0, 1, 1], [], []>} : vector<256x128xbf16>, vector<128x128xbf16>, vector<256x128xf32> -> vector<256x128xf32>
    %c0_27 = arith.constant 0 : index
    %c0_28 = arith.constant 0 : index
    %36 = vector.load %arg11[%c0_27, %c0_28] : memref<1x128xf32, #tpu.memory_space<vmem>>, vector<1x128xf32>
    %37 = vector.broadcast %36 : vector<1x128xf32> to vector<256x128xf32>
    %38 = arith.addf %35, %37 : vector<256x128xf32>
    %cst_29 = arith.constant dense<0xFF800000> : vector<256xf32>
    %39 = vector.multi_reduction <maximumf>, %38, %cst_29 [1] : vector<256x128xf32> to vector<256xf32>
    %40 = vector.shape_cast %39 : vector<256xf32> to vector<256x1xf32>
    %41 = vector.broadcast %40 : vector<256x1xf32> to vector<256x128xf32>
    %42 = arith.subf %38, %41 : vector<256x128xf32>
    %43 = math.exp %42 : vector<256x128xf32>
    %cst_30 = arith.constant dense<0.000000e+00> : vector<256xf32>
    %44 = vector.multi_reduction <add>, %43, %cst_30 [1] : vector<256x128xf32> to vector<256xf32>
    %45 = vector.shape_cast %44 : vector<256xf32> to vector<256x1xf32>
    %46 = math.log %45 : vector<256x1xf32>
    %47 = vector.broadcast %46 : vector<256x1xf32> to vector<256x128xf32>
    %48 = arith.subf %42, %47 : vector<256x128xf32>
    %c0_31 = arith.constant 0 : index
    %c0_32 = arith.constant 0 : index
    %49 = vector.load %arg12[%c0_31, %c0_32] : memref<256x128xf32, #tpu.memory_space<vmem>>, vector<256x128xf32>
    tpu.vector_store %arg12[%c0_31, %c0_32], %48 {strides = array<i32>} : memref<256x128xf32, #tpu.memory_space<vmem>>, vector<256x128xf32>,
    return
  }
  func.func @transform_0(%arg0: i32) -> (i32, i32) {
    %c0_i32 = arith.constant 0 : i32
    %c0_i32_0 = arith.constant 0 : i32
    return %arg0, %c0_i32 : i32, i32
  }
  func.func @transform_1(%arg0: i32) -> (i32, i32) {
    %c0_i32 = arith.constant 0 : i32
    %c0_i32_0 = arith.constant 0 : i32
    %c0_i32_1 = arith.constant 0 : i32
    return %c0_i32, %c0_i32_0 : i32, i32
  }
  func.func @transform_2(%arg0: i32) -> (i32, i32) {
    %c0_i32 = arith.constant 0 : i32
    %c0_i32_0 = arith.constant 0 : i32
    %c0_i32_1 = arith.constant 0 : i32
    return %c0_i32, %c0_i32_0 : i32, i32
  }
  func.func @transform_3(%arg0: i32) -> (i32, i32) {
    %c0_i32 = arith.constant 0 : i32
    %c0_i32_0 = arith.constant 0 : i32
    %c0_i32_1 = arith.constant 0 : i32
    return %c0_i32, %c0_i32_0 : i32, i32
  }
  func.func @transform_4(%arg0: i32) -> (i32, i32) {
    %c0_i32 = arith.constant 0 : i32
    %c0_i32_0 = arith.constant 0 : i32
    %c0_i32_1 = arith.constant 0 : i32
    return %c0_i32, %c0_i32_0 : i32, i32
  }
  func.func @transform_5(%arg0: i32) -> (i32, i32) {
    %c0_i32 = arith.constant 0 : i32
    %c0_i32_0 = arith.constant 0 : i32
    %c0_i32_1 = arith.constant 0 : i32
    return %c0_i32, %c0_i32_0 : i32, i32
  }
  func.func @transform_6(%arg0: i32) -> (i32, i32) {
    %c0_i32 = arith.constant 0 : i32
    %c0_i32_0 = arith.constant 0 : i32
    %c0_i32_1 = arith.constant 0 : i32
    return %c0_i32, %c0_i32_0 : i32, i32
  }
  func.func @transform_7(%arg0: i32) -> (i32, i32) {
    %c0_i32 = arith.constant 0 : i32
    %c0_i32_0 = arith.constant 0 : i32
    %c0_i32_1 = arith.constant 0 : i32
    return %c0_i32, %c0_i32_0 : i32, i32
  }
  func.func @transform_8(%arg0: i32) -> (i32, i32) {
    %c0_i32 = arith.constant 0 : i32
    %c0_i32_0 = arith.constant 0 : i32
    %c0_i32_1 = arith.constant 0 : i32
    return %c0_i32, %c0_i32_0 : i32, i32
  }
  func.func @transform_9(%arg0: i32) -> (i32, i32) {
    %c0_i32 = arith.constant 0 : i32
    %c0_i32_0 = arith.constant 0 : i32
    %c0_i32_1 = arith.constant 0 : i32
    return %c0_i32, %c0_i32_0 : i32, i32
  }
  func.func @transform_10(%arg0: i32) -> (i32, i32) {
    %c0_i32 = arith.constant 0 : i32
    %c0_i32_0 = arith.constant 0 : i32
    %c0_i32_1 = arith.constant 0 : i32
    return %c0_i32, %c0_i32_0 : i32, i32
  }
  func.func @transform_11(%arg0: i32) -> (i32, i32) {
    %c0_i32 = arith.constant 0 : i32
    %c0_i32_0 = arith.constant 0 : i32
    return %arg0, %c0_i32 : i32, i32
  }
}

</mosaic_0001>

<llo_original>
// kernel: advanced_net_forward.1
$region0: #{advanced_net_forward.1}
  #allocation0 [shape = 'u32[]', space=smem, size = 0x4, offset = 0x4, fixed_abs, tag = 'smem constant byte address 0x4 - core index']
  #allocation1 [shape = 'u32[144,128]{1,0:T(1,128)}', space=vmem, size = 0x12000, scoped, tag = 'internal scratch']
  %s0 = inlined_call_operand.hbm [shape: f32[512,256], index: 0, kind: input, shape index: {}]
  %s1 = inlined_call_operand.hbm [shape: bf16[256,128], index: 1, kind: input, shape index: {}]
  %s2 = inlined_call_operand.vmem [shape: f32[1,128], index: 2, kind: input, shape index: {}]
  %s3 = inlined_call_operand.hbm [shape: bf16[128,128], index: 3, kind: input, shape index: {}]
  %s4 = inlined_call_operand.vmem [shape: f32[1,128], index: 4, kind: input, shape index: {}]
  %s5 = inlined_call_operand.hbm [shape: bf16[128,128], index: 5, kind: input, shape index: {}]
  %s6 = inlined_call_operand.vmem [shape: f32[1,128], index: 6, kind: input, shape index: {}]
  %s7 = inlined_call_operand.hbm [shape: bf16[128,128], index: 7, kind: input, shape index: {}]
  %s8 = inlined_call_operand.vmem [shape: f32[1,128], index: 8, kind: input, shape index: {}]
  %s9 = inlined_call_operand.hbm [shape: bf16[128,128], index: 9, kind: input, shape index: {}]
  %s10 = inlined_call_operand.vmem [shape: f32[1,128], index: 10, kind: input, shape index: {}]
  %s11 = inlined_call_operand.vmem [shape: f32[512,128], index: 11, kind: output, shape index: {}]
  %s12 = sld [smem:[#allocation0]]
  $region101: #{advanced_net_forward.1} parent=0
    _
  %s14 = ssub.s32 1, %s12
  %s15 = scalar_select 0, %s14, %s12
  $region1: #{advanced_net_forward.1} parent=0
    #allocation2 [shape = 'u8[524288]{0}', space=vmem, size = 0x80000, scoped, tag = 'input window, operand 0']
    #allocation3 [shape = 's32[2]{0}', space=sflag, size = 0x8, scoped, tag = 'scoped memory for advanced_net_forward.1']
    #allocation4 [shape = 'u8[65536]{0}', space=vmem, size = 0x10000, scoped, tag = 'input window, operand 1, single buffered']
    #allocation5 [shape = 's32[1]{0}', space=sflag, size = 0x4, scoped, tag = 'scoped memory for advanced_net_forward.1']
    #allocation6 [shape = 'u8[32768]{0}', space=vmem, size = 0x8000, scoped, tag = 'input window, operand 3, single buffered']
    #allocation7 [shape = 'u8[32768]{0}', space=vmem, size = 0x8000, scoped, tag = 'input window, operand 5, single buffered']
    #allocation8 [shape = 's32[1]{0}', space=sflag, size = 0x4, scoped, tag = 'scoped memory for advanced_net_forward.1']
    #allocation9 [shape = 'u8[32768]{0}', space=vmem, size = 0x8000, scoped, tag = 'input window, operand 7, single buffered']
    #allocation10 [shape = 'u8[32768]{0}', space=vmem, size = 0x8000, scoped, tag = 'input window, operand 9, single buffered']
    #allocation11 [shape = 's32[1]{0}', space=sflag, size = 0x4, scoped, tag = 'scoped memory for advanced_net_forward.1']
    %16 = vsyncpa [#allocation3], 0
    %s17 = scalar_lea.sflag [#allocation3], 1
    %18 = vsyncpa %s17, 0
    %19 = vsyncpa [#allocation5], 0
    %20 = vsyncpa [#allocation8], 0
    %21 = vsyncpa [#allocation11], 0
    loop: start=0, step=1, limit=4
    $region2: #{advanced_net_forward.1} parent=1 // loop_pre_header
      _
    $region3: #{advanced_net_forward.1} parent=1 // loop_header
      %s23 = sphi 0, %s27
      %p24 = scmp.ge.s32.totalorder %s23, 4
      %s33 = sphi 0, %s35
      %s36 = sphi 0, %s33
      %s37 = sphi 0, %s36
      %s53 = sphi 0, %s37
      %s57 = sphi 0, %s57
      %s59 = sphi 0, %s57
      %s60 = sphi 0, %s59
      %s74 = sphi 0, %s60
      %s78 = sphi 0, %s78
      %s80 = sphi 0, %s78
      %s81 = sphi 0, %s80
      %s95 = sphi 0, %s81
      %s99 = sphi 0, %s99
      %s101 = sphi 0, %s99
      %s102 = sphi 0, %s101
      %s116 = sphi 0, %s102
      %s120 = sphi 0, %s120
      %s122 = sphi 0, %s120
      %s123 = sphi 0, %s122
      %s137 = sphi 0, %s123
      %s141 = sphi 0, %s141
      %s143 = sphi 0, %s141
      %s144 = sphi 0, %s143
      %s158 = sphi 0, %s144
      %s162 = sphi 0, %s162
      %s164 = sphi 0, %s162
      %s165 = sphi 0, %s164
      %s179 = sphi 0, %s165
      %s183 = sphi 0, %s183
      %s185 = sphi 0, %s183
      %s186 = sphi 0, %s185
      %s200 = sphi 0, %s186
      %s204 = sphi 0, %s204
      %s206 = sphi 0, %s204
      %s207 = sphi 0, %s206
      %s221 = sphi 0, %s207
      %s225 = sphi 0, %s225
      %s227 = sphi 0, %s225
      %s228 = sphi 0, %s227
      %s242 = sphi 0, %s228
      %s246 = sphi 0, %s246
      %s248 = sphi 0, %s246
      %s249 = sphi 0, %s248
      %s263 = sphi 0, %s249
      %s269 = sphi 0, %s271
      %s272 = sphi 0, %s269
      %s273 = sphi 0, %s272
      %s289 = sphi 0, %s273
    $region4: #{advanced_net_forward.1} parent=1 // loop_header_branch
      %26 = sbr.rel (%p24) target = $region8
    $region5: #{advanced_net_forward.1} parent=1 // loop_body
      %s28 = ssub.s32 %s23, 1
      %s29 = ssub.s32 %s23, 2
      %s30 = sadd.s32 %s23, 1
      %s31 = ssub.s32 %s23, %s30
      %p32 = scmp.eq.s32.totalorder %s31, 0
      %s34 = sadd.s32 %s33, 1
      %s35 = scalar_select %p32, %s33, %s34
      %p38 = pneg %p32
      %p39 = scmp.eq.s32.totalorder %s23, 1
      %p40 = por %p38, %p39
      %p41 = scmp.ne.s32.totalorder %s33, %s36
      %p42 = scmp.eq.s32.totalorder %s23, 0
      %p43 = por %p41, %p42
      %p44 = scmp.ne.s32.totalorder %s33, %s36
      %p45 = scmp.eq.s32.totalorder %s28, 1
      %p46 = por %p44, %p45
      %p47 = scmp.ne.s32.totalorder %s36, %s37
      %p48 = scmp.eq.s32.totalorder %s28, 0
      %p49 = por %p47, %p48
      %p50 = scmp.ne.s32.totalorder %s36, %s37
      %p51 = scmp.eq.s32.totalorder %s29, 1
      %p52 = por %p50, %p51
      %p54 = scmp.ne.s32.totalorder %s37, %s53
      %p55 = scmp.eq.s32.totalorder %s29, 0
      %p56 = por %p54, %p55
      %s58 = sadd.s32 %s57, 1
      %p61 = scmp.eq.s32.totalorder %s23, 1
      %p62 = scmp.ne.s32.totalorder %s57, %s59
      %p63 = scmp.eq.s32.totalorder %s23, 0
      %p64 = por %p62, %p63
      %p65 = scmp.ne.s32.totalorder %s57, %s59
      %p66 = scmp.eq.s32.totalorder %s28, 1
      %p67 = por %p65, %p66
      %p68 = scmp.ne.s32.totalorder %s59, %s60
      %p69 = scmp.eq.s32.totalorder %s28, 0
      %p70 = por %p68, %p69
      %p71 = scmp.ne.s32.totalorder %s59, %s60
      %p72 = scmp.eq.s32.totalorder %s29, 1
      %p73 = por %p71, %p72
      %p75 = scmp.ne.s32.totalorder %s60, %s74
      %p76 = scmp.eq.s32.totalorder %s29, 0
      %p77 = por %p75, %p76
      %s79 = sadd.s32 %s78, 1
      %p82 = scmp.eq.s32.totalorder %s23, 1
      %p83 = scmp.ne.s32.totalorder %s78, %s80
      %p84 = scmp.eq.s32.totalorder %s23, 0
      %p85 = por %p83, %p84
      %p86 = scmp.ne.s32.totalorder %s78, %s80
      %p87 = scmp.eq.s32.totalorder %s28, 1
      %p88 = por %p86, %p87
      %p89 = scmp.ne.s32.totalorder %s80, %s81
      %p90 = scmp.eq.s32.totalorder %s28, 0
      %p91 = por %p89, %p90
      %p92 = scmp.ne.s32.totalorder %s80, %s81
      %p93 = scmp.eq.s32.totalorder %s29, 1
      %p94 = por %p92, %p93
      %p96 = scmp.ne.s32.totalorder %s81, %s95
      %p97 = scmp.eq.s32.totalorder %s29, 0
      %p98 = por %p96, %p97
      %s100 = sadd.s32 %s99, 1
      %p103 = scmp.eq.s32.totalorder %s23, 1
      %p104 = scmp.ne.s32.totalorder %s99, %s101
      %p105 = scmp.eq.s32.totalorder %s23, 0
      %p106 = por %p104, %p105
      %p107 = scmp.ne.s32.totalorder %s99, %s101
      %p108 = scmp.eq.s32.totalorder %s28, 1
      %p109 = por %p107, %p108
      %p110 = scmp.ne.s32.totalorder %s101, %s102
      %p111 = scmp.eq.s32.totalorder %s28, 0
      %p112 = por %p110, %p111
      %p113 = scmp.ne.s32.totalorder %s101, %s102
      %p114 = scmp.eq.s32.totalorder %s29, 1
      %p115 = por %p113, %p114
      %p117 = scmp.ne.s32.totalorder %s102, %s116
      %p118 = scmp.eq.s32.totalorder %s29, 0
      %p119 = por %p117, %p118
      %s121 = sadd.s32 %s120, 1
      %p124 = scmp.eq.s32.totalorder %s23, 1
      %p125 = scmp.ne.s32.totalorder %s120, %s122
      %p126 = scmp.eq.s32.totalorder %s23, 0
      %p127 = por %p125, %p126
      %p128 = scmp.ne.s32.totalorder %s120, %s122
      %p129 = scmp.eq.s32.totalorder %s28, 1
      %p130 = por %p128, %p129
      %p131 = scmp.ne.s32.totalorder %s122, %s123
      %p132 = scmp.eq.s32.totalorder %s28, 0
      %p133 = por %p131, %p132
      %p134 = scmp.ne.s32.totalorder %s122, %s123
      %p135 = scmp.eq.s32.totalorder %s29, 1
      %p136 = por %p134, %p135
      %p138 = scmp.ne.s32.totalorder %s123, %s137
      %p139 = scmp.eq.s32.totalorder %s29, 0
      %p140 = por %p138, %p139
      %s142 = sadd.s32 %s141, 1
      %p145 = scmp.eq.s32.totalorder %s23, 1
      %p146 = scmp.ne.s32.totalorder %s141, %s143
      %p147 = scmp.eq.s32.totalorder %s23, 0
      %p148 = por %p146, %p147
      %p149 = scmp.ne.s32.totalorder %s141, %s143
      %p150 = scmp.eq.s32.totalorder %s28, 1
      %p151 = por %p149, %p150
      %p152 = scmp.ne.s32.totalorder %s143, %s144
      %p153 = scmp.eq.s32.totalorder %s28, 0
      %p154 = por %p152, %p153
      %p155 = scmp.ne.s32.totalorder %s143, %s144
      %p156 = scmp.eq.s32.totalorder %s29, 1
      %p157 = por %p155, %p156
      %p159 = scmp.ne.s32.totalorder %s144, %s158
      %p160 = scmp.eq.s32.totalorder %s29, 0
      %p161 = por %p159, %p160
      %s163 = sadd.s32 %s162, 1
      %p166 = scmp.eq.s32.totalorder %s23, 1
      %p167 = scmp.ne.s32.totalorder %s162, %s164
      %p168 = scmp.eq.s32.totalorder %s23, 0
      %p169 = por %p167, %p168
      %p170 = scmp.ne.s32.totalorder %s162, %s164
      %p171 = scmp.eq.s32.totalorder %s28, 1
      %p172 = por %p170, %p171
      %p173 = scmp.ne.s32.totalorder %s164, %s165
      %p174 = scmp.eq.s32.totalorder %s28, 0
      %p175 = por %p173, %p174
      %p176 = scmp.ne.s32.totalorder %s164, %s165
      %p177 = scmp.eq.s32.totalorder %s29, 1
      %p178 = por %p176, %p177
      %p180 = scmp.ne.s32.totalorder %s165, %s179
      %p181 = scmp.eq.s32.totalorder %s29, 0
      %p182 = por %p180, %p181
      %s184 = sadd.s32 %s183, 1
      %p187 = scmp.eq.s32.totalorder %s23, 1
      %p188 = scmp.ne.s32.totalorder %s183, %s185
      %p189 = scmp.eq.s32.totalorder %s23, 0
      %p190 = por %p188, %p189
      %p191 = scmp.ne.s32.totalorder %s183, %s185
      %p192 = scmp.eq.s32.totalorder %s28, 1
      %p193 = por %p191, %p192
      %p194 = scmp.ne.s32.totalorder %s185, %s186
      %p195 = scmp.eq.s32.totalorder %s28, 0
      %p196 = por %p194, %p195
      %p197 = scmp.ne.s32.totalorder %s185, %s186
      %p198 = scmp.eq.s32.totalorder %s29, 1
      %p199 = por %p197, %p198
      %p201 = scmp.ne.s32.totalorder %s186, %s200
      %p202 = scmp.eq.s32.totalorder %s29, 0
      %p203 = por %p201, %p202
      %s205 = sadd.s32 %s204, 1
      %p208 = scmp.eq.s32.totalorder %s23, 1
      %p209 = scmp.ne.s32.totalorder %s204, %s206
      %p210 = scmp.eq.s32.totalorder %s23, 0
      %p211 = por %p209, %p210
      %p212 = scmp.ne.s32.totalorder %s204, %s206
      %p213 = scmp.eq.s32.totalorder %s28, 1
      %p214 = por %p212, %p213
      %p215 = scmp.ne.s32.totalorder %s206, %s207
      %p216 = scmp.eq.s32.totalorder %s28, 0
      %p217 = por %p215, %p216
      %p218 = scmp.ne.s32.totalorder %s206, %s207
      %p219 = scmp.eq.s32.totalorder %s29, 1
      %p220 = por %p218, %p219
      %p222 = scmp.ne.s32.totalorder %s207, %s221
      %p223 = scmp.eq.s32.totalorder %s29, 0
      %p224 = por %p222, %p223
      %s226 = sadd.s32 %s225, 1
      %p229 = scmp.eq.s32.totalorder %s23, 1
      %p230 = scmp.ne.s32.totalorder %s225, %s227
      %p231 = scmp.eq.s32.totalorder %s23, 0
      %p232 = por %p230, %p231
      %p233 = scmp.ne.s32.totalorder %s225, %s227
      %p234 = scmp.eq.s32.totalorder %s28, 1
      %p235 = por %p233, %p234
      %p236 = scmp.ne.s32.totalorder %s227, %s228
      %p237 = scmp.eq.s32.totalorder %s28, 0
      %p238 = por %p236, %p237
      %p239 = scmp.ne.s32.totalorder %s227, %s228
      %p240 = scmp.eq.s32.totalorder %s29, 1
      %p241 = por %p239, %p240
      %p243 = scmp.ne.s32.totalorder %s228, %s242
      %p244 = scmp.eq.s32.totalorder %s29, 0
      %p245 = por %p243, %p244
      %s247 = sadd.s32 %s246, 1
      %p250 = scmp.eq.s32.totalorder %s23, 1
      %p251 = scmp.ne.s32.totalorder %s246, %s248
      %p252 = scmp.eq.s32.totalorder %s23, 0
      %p253 = por %p251, %p252
      %p254 = scmp.ne.s32.totalorder %s246, %s248
      %p255 = scmp.eq.s32.totalorder %s28, 1
      %p256 = por %p254, %p255
      %p257 = scmp.ne.s32.totalorder %s248, %s249
      %p258 = scmp.eq.s32.totalorder %s28, 0
      %p259 = por %p257, %p258
      %p260 = scmp.ne.s32.totalorder %s248, %s249
      %p261 = scmp.eq.s32.totalorder %s29, 1
      %p262 = por %p260, %p261
      %p264 = scmp.ne.s32.totalorder %s249, %s263
      %p265 = scmp.eq.s32.totalorder %s29, 0
      %p266 = por %p264, %p265
      %s267 = ssub.s32 %s23, %s30
      %p268 = scmp.eq.s32.totalorder %s267, 0
      %s270 = sadd.s32 %s269, 1
      %s271 = scalar_select %p268, %s269, %s270
      %p274 = pneg %p268
      %p275 = scmp.eq.s32.totalorder %s23, 1
      %p276 = por %p274, %p275
      %p277 = scmp.ne.s32.totalorder %s269, %s272
      %p278 = scmp.eq.s32.totalorder %s23, 0
      %p279 = por %p277, %p278
      %p280 = scmp.ne.s32.totalorder %s269, %s272
      %p281 = scmp.eq.s32.totalorder %s28, 1
      %p282 = por %p280, %p281
      %p283 = scmp.ne.s32.totalorder %s272, %s273
      %p284 = scmp.eq.s32.totalorder %s28, 0
      %p285 = por %p283, %p284
      %p286 = scmp.ne.s32.totalorder %s272, %s273
      %p287 = scmp.eq.s32.totalorder %s29, 1
      %p288 = por %p286, %p287
      %p290 = scmp.ne.s32.totalorder %s273, %s289
      %p291 = scmp.eq.s32.totalorder %s29, 0
      %p292 = por %p290, %p291
      %p293 = scmp.le.s32.totalorder 1, %s23
      %p294 = scmp.lt.s32.totalorder %s23, 3
      %p295 = pnand %p293, %p294
      %p296 = pneg %p295
      // Predicated region
      $region9: #{advanced_net_forward.1} parent=5 // pred_check
        _
      $region10: #{advanced_net_forward.1} parent=5 // pred_check_branch
        %298 = sbr.rel (%p295) target = $region12
      $region11: #{advanced_net_forward.1} parent=5 // pred_region
        %s299 = ssub.s32 %s23, 1
        // Predicated region
        $region13: #{advanced_net_forward.1} parent=11 // pred_check
          %p300 = pneg %p70
        $region14: #{advanced_net_forward.1} parent=11 // pred_check_branch
          %302 = sbr.rel (%p300) target = $region16
        $region15: #{advanced_net_forward.1} parent=11 // pred_region
          %s304 = ssub.s32 2048, 2048
          %305 = vsyncadd [#allocation5], %s304
          %s306 = sshll.u32 [#allocation4], 4
          %s307 = int_to_ptr.vmem [resolvable:$true] %s306
          %312 = dma.hbm_to_vmem [thread:$0]  %s1, 2048, %s307, [#allocation5], 64, 64, 4
        $region16: #{advanced_net_forward.1} parent=11 // pred_fallthru
          _
        // Predicated region
        $region17: #{advanced_net_forward.1} parent=11 // pred_check
          %p313 = pneg %p91
        $region18: #{advanced_net_forward.1} parent=11 // pred_check_branch
          %315 = sbr.rel (%p313) target = $region20
        $region19: #{advanced_net_forward.1} parent=11 // pred_region
          _
        $region20: #{advanced_net_forward.1} parent=11 // pred_fallthru
          _
        // Predicated region
        $region21: #{advanced_net_forward.1} parent=11 // pred_check
          %p316 = pneg %p112
        $region22: #{advanced_net_forward.1} parent=11 // pred_check_branch
          %318 = sbr.rel (%p316) target = $region24
        $region23: #{advanced_net_forward.1} parent=11 // pred_region
          %s320 = ssub.s32 1024, 1024
          %321 = vsyncadd [#allocation5], %s320
          %s322 = sshll.u32 [#allocation6], 4
          %s323 = int_to_ptr.vmem [resolvable:$true] %s322
          %328 = dma.hbm_to_vmem [thread:$0]  %s3, 1024, %s323, [#allocation5], 64, 64, 4
        $region24: #{advanced_net_forward.1} parent=11 // pred_fallthru
          _
        // Predicated region
        $region25: #{advanced_net_forward.1} parent=11 // pred_check
          %p329 = pneg %p133
        $region26: #{advanced_net_forward.1} parent=11 // pred_check_branch
          %331 = sbr.rel (%p329) target = $region28
        $region27: #{advanced_net_forward.1} parent=11 // pred_region
          _
        $region28: #{advanced_net_forward.1} parent=11 // pred_fallthru
          _
        // Predicated region
        $region29: #{advanced_net_forward.1} parent=11 // pred_check
          %p332 = pneg %p154
        $region30: #{advanced_net_forward.1} parent=11 // pred_check_branch
          %334 = sbr.rel (%p332) target = $region32
        $region31: #{advanced_net_forward.1} parent=11 // pred_region
          %s336 = ssub.s32 1024, 1024
          %337 = vsyncadd [#allocation8], %s336
          %s338 = sshll.u32 [#allocation7], 4
          %s339 = int_to_ptr.vmem [resolvable:$true] %s338
          %344 = dma.hbm_to_vmem [thread:$0]  %s5, 1024, %s339, [#allocation8], 64, 64, 4
        $region32: #{advanced_net_forward.1} parent=11 // pred_fallthru
          _
        // Predicated region
        $region33: #{advanced_net_forward.1} parent=11 // pred_check
          %p345 = pneg %p175
        $region34: #{advanced_net_forward.1} parent=11 // pred_check_branch
          %347 = sbr.rel (%p345) target = $region36
        $region35: #{advanced_net_forward.1} parent=11 // pred_region
          _
        $region36: #{advanced_net_forward.1} parent=11 // pred_fallthru
          _
        // Predicated region
        $region37: #{advanced_net_forward.1} parent=11 // pred_check
          %p348 = pneg %p196
        $region38: #{advanced_net_forward.1} parent=11 // pred_check_branch
          %350 = sbr.rel (%p348) target = $region40
        $region39: #{advanced_net_forward.1} parent=11 // pred_region
          %s352 = ssub.s32 1024, 1024
          %353 = vsyncadd [#allocation8], %s352
          %s354 = sshll.u32 [#allocation9], 4
          %s355 = int_to_ptr.vmem [resolvable:$true] %s354
          %360 = dma.hbm_to_vmem [thread:$0]  %s7, 1024, %s355, [#allocation8], 64, 64, 4
        $region40: #{advanced_net_forward.1} parent=11 // pred_fallthru
          _
        // Predicated region
        $region41: #{advanced_net_forward.1} parent=11 // pred_check
          %p361 = pneg %p217
        $region42: #{advanced_net_forward.1} parent=11 // pred_check_branch
          %363 = sbr.rel (%p361) target = $region44
        $region43: #{advanced_net_forward.1} parent=11 // pred_region
          _
        $region44: #{advanced_net_forward.1} parent=11 // pred_fallthru
          _
        // Predicated region
        $region45: #{advanced_net_forward.1} parent=11 // pred_check
          %p364 = pneg %p238
        $region46: #{advanced_net_forward.1} parent=11 // pred_check_branch
          %366 = sbr.rel (%p364) target = $region48
        $region47: #{advanced_net_forward.1} parent=11 // pred_region
          %s368 = ssub.s32 1024, 1024
          %369 = vsyncadd [#allocation11], %s368
          %s370 = sshll.u32 [#allocation10], 4
          %s371 = int_to_ptr.vmem [resolvable:$true] %s370
          %376 = dma.hbm_to_vmem [thread:$0]  %s9, 1024, %s371, [#allocation11], 64, 64, 4
        $region48: #{advanced_net_forward.1} parent=11 // pred_fallthru
          _
        // Predicated region
        $region49: #{advanced_net_forward.1} parent=11 // pred_check
          %p377 = pneg %p259
        $region50: #{advanced_net_forward.1} parent=11 // pred_check_branch
          %379 = sbr.rel (%p377) target = $region52
        $region51: #{advanced_net_forward.1} parent=11 // pred_region
          _
        $region52: #{advanced_net_forward.1} parent=11 // pred_fallthru
          _
      $region12: #{advanced_net_forward.1} parent=5 // pred_fallthru
        _
      %p380 = scmp.lt.s32.totalorder %s23, 2
      // Predicated region
      $region53: #{advanced_net_forward.1} parent=5 // pred_check
        %p381 = pneg %p380
      $region54: #{advanced_net_forward.1} parent=5 // pred_check_branch
        %383 = sbr.rel (%p381) target = $region56
      $region55: #{advanced_net_forward.1} parent=5 // pred_region
        // Predicated region
        $region57: #{advanced_net_forward.1} parent=55 // pred_check
          %p384 = pneg %p43
        $region58: #{advanced_net_forward.1} parent=55 // pred_check_branch
          %386 = sbr.rel (%p384) target = $region60
        $region59: #{advanced_net_forward.1} parent=55 // pred_region
          %s387 = sand.u32 %s33, 1
          %s388 = scalar_lea.sflag [#allocation3], %s387
          %s389 = sand.u32 %s33, 1
          %s390 = smul.addr %s389, 512
          %s391 = scalar_lea.vmem [#allocation2], %s390
          %s392 = smul.u32 32, %s23
          %s394 = ssub.s32 8192, 8192
          %395 = vsyncadd %s388, %s394
          %s396 = smul.addr %s392, 2
          %s397 = smul.addr %s396, 128
          %s398 = scalar_lea.hbm %s0, %s397
          %s399 = sshll.u32 %s391, 4
          %s400 = int_to_ptr.vmem [resolvable:$true] %s399
          %405 = dma.hbm_to_vmem [thread:$0]  %s398, 8192, %s400, %s388, 256, 256, 16
        $region60: #{advanced_net_forward.1} parent=55 // pred_fallthru
          _
      $region56: #{advanced_net_forward.1} parent=5 // pred_fallthru
        _
      %p406 = scmp.le.s32.totalorder 1, %s23
      %p407 = scmp.lt.s32.totalorder %s23, 3
      %p408 = pnand %p406, %p407
      %p409 = pneg %p408
      // Predicated region
      $region61: #{advanced_net_forward.1} parent=5 // pred_check
        _
      $region62: #{advanced_net_forward.1} parent=5 // pred_check_branch
        %411 = sbr.rel (%p408) target = $region64
      $region63: #{advanced_net_forward.1} parent=5 // pred_region
        %s412 = ssub.s32 %s23, 1
        %s413 = sand.u32 %s36, 1
        %s414 = scalar_lea.sflag [#allocation3], %s413
        %s415 = sand.u32 %s36, 1
        %s416 = smul.addr %s415, 512
        %s417 = scalar_lea.vmem [#allocation2], %s416
        // Predicated region
        $region65: #{advanced_net_forward.1} parent=63 // pred_check
          %p418 = pneg %p49
        $region66: #{advanced_net_forward.1} parent=63 // pred_check_branch
          %420 = sbr.rel (%p418) target = $region68
        $region67: #{advanced_net_forward.1} parent=63 // pred_region
          %421 = dma.done %s414, 8192
        $region68: #{advanced_net_forward.1} parent=63 // pred_fallthru
          _
        // Predicated region
        $region69: #{advanced_net_forward.1} parent=63 // pred_check
          %p422 = pneg %p70
        $region70: #{advanced_net_forward.1} parent=63 // pred_check_branch
          %424 = sbr.rel (%p422) target = $region72
        $region71: #{advanced_net_forward.1} parent=63 // pred_region
          %425 = dma.done [#allocation5], 2048
        $region72: #{advanced_net_forward.1} parent=63 // pred_fallthru
          _
        // Predicated region
        $region73: #{advanced_net_forward.1} parent=63 // pred_check
          %p426 = pneg %p112
        $region74: #{advanced_net_forward.1} parent=63 // pred_check_branch
          %428 = sbr.rel (%p426) target = $region76
        $region75: #{advanced_net_forward.1} parent=63 // pred_region
          %429 = dma.done [#allocation5], 1024
        $region76: #{advanced_net_forward.1} parent=63 // pred_fallthru
          _
        // Predicated region
        $region77: #{advanced_net_forward.1} parent=63 // pred_check
          %p430 = pneg %p154
        $region78: #{advanced_net_forward.1} parent=63 // pred_check_branch
          %432 = sbr.rel (%p430) target = $region80
        $region79: #{advanced_net_forward.1} parent=63 // pred_region
          %433 = dma.done [#allocation8], 1024
        $region80: #{advanced_net_forward.1} parent=63 // pred_fallthru
          _
        // Predicated region
        $region81: #{advanced_net_forward.1} parent=63 // pred_check
          %p434 = pneg %p196
        $region82: #{advanced_net_forward.1} parent=63 // pred_check_branch
          %436 = sbr.rel (%p434) target = $region84
        $region83: #{advanced_net_forward.1} parent=63 // pred_region
          %437 = dma.done [#allocation8], 1024
        $region84: #{advanced_net_forward.1} parent=63 // pred_fallthru
          _
        // Predicated region
        $region85: #{advanced_net_forward.1} parent=63 // pred_check
          %p438 = pneg %p238
        $region86: #{advanced_net_forward.1} parent=63 // pred_check_branch
          %440 = sbr.rel (%p438) target = $region88
        $region87: #{advanced_net_forward.1} parent=63 // pred_region
          %441 = dma.done [#allocation11], 1024
        $region88: #{advanced_net_forward.1} parent=63 // pred_fallthru
          _
        %s442 = sand.u32 %s36, 1
        %s443 = scalar_lea.sflag [#allocation3], %s442
        %s444 = sand.u32 %s36, 1
        %s445 = smul.addr %s444, 512
        %s446 = scalar_lea.vmem [#allocation2], %s445
        %p447 = pneg %p49
        %p448 = pneg %p46
        %p449 = pneg %p70
        %p450 = pneg %p67
        %p451 = pneg %p91
        %p452 = pneg %p88
        %p453 = pneg %p112
        %p454 = pneg %p109
        %p455 = pneg %p133
        %p456 = pneg %p130
        %p457 = pneg %p154
        %p458 = pneg %p151
        %p459 = pneg %p175
        %p460 = pneg %p172
        %p461 = pneg %p196
        %p462 = pneg %p193
        %p463 = pneg %p217
        %p464 = pneg %p214
        %p465 = pneg %p238
        %p466 = pneg %p235
        %p467 = pneg %p259
        %p468 = pneg %p256
        %p469 = pneg %p285
        %p470 = pneg %p282
        %s471 = smul.u32 32, %s28
        %p472 = scmp.lt.s32.totalorder %s471, 63
        %s473 = scalar_select %p472, %s471, 63
        %s474 = smul.addr %s473, 8
        %s475 = scalar_lea.vmem %s11, %s474
        %s476 = smul.u32 32, %s28
        %s477 = smul.u32 32, %s28
        %p478 = scmp.lt.s32.totalorder %s477, 63
        %s479 = scalar_select %p478, %s477, 63
        %s480 = smul.addr %s479, 8
        %s481 = scalar_lea.vmem %s11, %s480
        %s482 = smul.u32 32, %s28
        %v484 = vld [vmem:[%s417] sm:$0xff]
        %v485 = vld [vmem:[%s417 + $0x8] sm:$0xff]
        %v486 = vld [vmem:[%s417 + $0x10] sm:$0xff]
        %v487 = vld [vmem:[%s417 + $0x18] sm:$0xff]
        %v488 = vld [vmem:[%s417 + $0x20] sm:$0xff]
        %v489 = vld [vmem:[%s417 + $0x28] sm:$0xff]
        %v490 = vld [vmem:[%s417 + $0x30] sm:$0xff]
        %v491 = vld [vmem:[%s417 + $0x38] sm:$0xff]
        %v492 = vld [vmem:[%s417 + $0x40] sm:$0xff]
        %v493 = vld [vmem:[%s417 + $0x48] sm:$0xff]
        %v494 = vld [vmem:[%s417 + $0x50] sm:$0xff]
        %v495 = vld [vmem:[%s417 + $0x58] sm:$0xff]
        %v496 = vld [vmem:[%s417 + $0x60] sm:$0xff]
        %v497 = vld [vmem:[%s417 + $0x68] sm:$0xff]
        %v498 = vld [vmem:[%s417 + $0x70] sm:$0xff]
        %v499 = vld [vmem:[%s417 + $0x78] sm:$0xff]
        %v500 = vld [vmem:[%s417 + $0x80] sm:$0xff]
        %v501 = vld [vmem:[%s417 + $0x88] sm:$0xff]
        %v502 = vld [vmem:[%s417 + $0x90] sm:$0xff]
        %v503 = vld [vmem:[%s417 + $0x98] sm:$0xff]
        %v504 = vld [vmem:[%s417 + $0xa0] sm:$0xff]
        %v505 = vld [vmem:[%s417 + $0xa8] sm:$0xff]
        %v506 = vld [vmem:[%s417 + $0xb0] sm:$0xff]
        %v507 = vld [vmem:[%s417 + $0xb8] sm:$0xff]
        %v508 = vld [vmem:[%s417 + $0xc0] sm:$0xff]
        %v509 = vld [vmem:[%s417 + $0xc8] sm:$0xff]
        %v510 = vld [vmem:[%s417 + $0xd0] sm:$0xff]
        %v511 = vld [vmem:[%s417 + $0xd8] sm:$0xff]
        %v512 = vld [vmem:[%s417 + $0xe0] sm:$0xff]
        %v513 = vld [vmem:[%s417 + $0xe8] sm:$0xff]
        %v514 = vld [vmem:[%s417 + $0xf0] sm:$0xff]
        %v515 = vld [vmem:[%s417 + $0xf8] sm:$0xff]
        %v516 = vld [vmem:[%s417 + $0x100] sm:$0xff]
        %v517 = vld [vmem:[%s417 + $0x108] sm:$0xff]
        %v518 = vld [vmem:[%s417 + $0x110] sm:$0xff]
        %v519 = vld [vmem:[%s417 + $0x118] sm:$0xff]
        %v520 = vld [vmem:[%s417 + $0x120] sm:$0xff]
        %v521 = vld [vmem:[%s417 + $0x128] sm:$0xff]
        %v522 = vld [vmem:[%s417 + $0x130] sm:$0xff]
        %v523 = vld [vmem:[%s417 + $0x138] sm:$0xff]
        %v524 = vld [vmem:[%s417 + $0x140] sm:$0xff]
        %v525 = vld [vmem:[%s417 + $0x148] sm:$0xff]
        %v526 = vld [vmem:[%s417 + $0x150] sm:$0xff]
        %v527 = vld [vmem:[%s417 + $0x158] sm:$0xff]
        %v528 = vld [vmem:[%s417 + $0x160] sm:$0xff]
        %v529 = vld [vmem:[%s417 + $0x168] sm:$0xff]
        %v530 = vld [vmem:[%s417 + $0x170] sm:$0xff]
        %v531 = vld [vmem:[%s417 + $0x178] sm:$0xff]
        %v532 = vld [vmem:[%s417 + $0x180] sm:$0xff]
        %v533 = vld [vmem:[%s417 + $0x188] sm:$0xff]
        %v534 = vld [vmem:[%s417 + $0x190] sm:$0xff]
        %v535 = vld [vmem:[%s417 + $0x198] sm:$0xff]
        %v536 = vld [vmem:[%s417 + $0x1a0] sm:$0xff]
        %v537 = vld [vmem:[%s417 + $0x1a8] sm:$0xff]
        %v538 = vld [vmem:[%s417 + $0x1b0] sm:$0xff]
        %v539 = vld [vmem:[%s417 + $0x1b8] sm:$0xff]
        %v540 = vld [vmem:[%s417 + $0x1c0] sm:$0xff]
        %v541 = vld [vmem:[%s417 + $0x1c8] sm:$0xff]
        %v542 = vld [vmem:[%s417 + $0x1d0] sm:$0xff]
        %v543 = vld [vmem:[%s417 + $0x1d8] sm:$0xff]
        %v544 = vld [vmem:[%s417 + $0x1e0] sm:$0xff]
        %v545 = vld [vmem:[%s417 + $0x1e8] sm:$0xff]
        %v546 = vld [vmem:[%s417 + $0x1f0] sm:$0xff]
        %v547 = vld [vmem:[%s417 + $0x1f8] sm:$0xff]
        %v548 = vpack.c.bf16 %v486, %v484
        %v549 = vpack.c.bf16 %v487, %v485
        %v550 = vpack.c.bf16 %v490, %v488
        %v551 = vpack.c.bf16 %v491, %v489
        %v552 = vpack.c.bf16 %v494, %v492
        %v553 = vpack.c.bf16 %v495, %v493
        %v554 = vpack.c.bf16 %v498, %v496
        %v555 = vpack.c.bf16 %v499, %v497
        %v556 = vpack.c.bf16 %v502, %v500
        %v557 = vpack.c.bf16 %v503, %v501
        %v558 = vpack.c.bf16 %v506, %v504
        %v559 = vpack.c.bf16 %v507, %v505
        %v560 = vpack.c.bf16 %v510, %v508
        %v561 = vpack.c.bf16 %v511, %v509
        %v562 = vpack.c.bf16 %v514, %v512
        %v563 = vpack.c.bf16 %v515, %v513
        %v564 = vpack.c.bf16 %v518, %v516
        %v565 = vpack.c.bf16 %v519, %v517
        %v566 = vpack.c.bf16 %v522, %v520
        %v567 = vpack.c.bf16 %v523, %v521
        %v568 = vpack.c.bf16 %v526, %v524
        %v569 = vpack.c.bf16 %v527, %v525
        %v570 = vpack.c.bf16 %v530, %v528
        %v571 = vpack.c.bf16 %v531, %v529
        %v572 = vpack.c.bf16 %v534, %v532
        %v573 = vpack.c.bf16 %v535, %v533
        %v574 = vpack.c.bf16 %v538, %v536
        %v575 = vpack.c.bf16 %v539, %v537
        %v576 = vpack.c.bf16 %v542, %v540
        %v577 = vpack.c.bf16 %v543, %v541
        %v578 = vpack.c.bf16 %v546, %v544
        %v579 = vpack.c.bf16 %v547, %v545
        %v580 = vld [vmem:[#allocation4] sm:$0xf]
        %v581 = vld [vmem:[#allocation4 + $0x4] sm:$0xf]
        %v582 = vld [vmem:[#allocation4 + $0x8] sm:$0xf]
        %v583 = vld [vmem:[#allocation4 + $0xc] sm:$0xf]
        %v584 = vld [vmem:[#allocation4 + $0x10] sm:$0xf]
        %v585 = vld [vmem:[#allocation4 + $0x14] sm:$0xf]
        %v586 = vld [vmem:[#allocation4 + $0x18] sm:$0xf]
        %v587 = vld [vmem:[#allocation4 + $0x1c] sm:$0xf]
        %v588 = vld [vmem:[#allocation4 + $0x20] sm:$0xf]
        %v589 = vld [vmem:[#allocation4 + $0x24] sm:$0xf]
        %v590 = vld [vmem:[#allocation4 + $0x28] sm:$0xf]
        %v591 = vld [vmem:[#allocation4 + $0x2c] sm:$0xf]
        %v592 = vld [vmem:[#allocation4 + $0x30] sm:$0xf]
        %v593 = vld [vmem:[#allocation4 + $0x34] sm:$0xf]
        %v594 = vld [vmem:[#allocation4 + $0x38] sm:$0xf]
        %v595 = vld [vmem:[#allocation4 + $0x3c] sm:$0xf]
        %v596 = vld [vmem:[#allocation4 + $0x40] sm:$0xf]
        %v597 = vld [vmem:[#allocation4 + $0x44] sm:$0xf]
        %v598 = vld [vmem:[#allocation4 + $0x48] sm:$0xf]
        %v599 = vld [vmem:[#allocation4 + $0x4c] sm:$0xf]
        %v600 = vld [vmem:[#allocation4 + $0x50] sm:$0xf]
        %v601 = vld [vmem:[#allocation4 + $0x54] sm:$0xf]
        %v602 = vld [vmem:[#allocation4 + $0x58] sm:$0xf]
        %v603 = vld [vmem:[#allocation4 + $0x5c] sm:$0xf]
        %v604 = vld [vmem:[#allocation4 + $0x60] sm:$0xf]
        %v605 = vld [vmem:[#allocation4 + $0x64] sm:$0xf]
        %v606 = vld [vmem:[#allocation4 + $0x68] sm:$0xf]
        %v607 = vld [vmem:[#allocation4 + $0x6c] sm:$0xf]
        %v608 = vld [vmem:[#allocation4 + $0x70] sm:$0xf]
        %v609 = vld [vmem:[#allocation4 + $0x74] sm:$0xf]
        %v610 = vld [vmem:[#allocation4 + $0x78] sm:$0xf]
        %v611 = vld [vmem:[#allocation4 + $0x7c] sm:$0xf]
        %v612 = vld [vmem:[%s2] sm:$0x1]
        %v614 = vlaneseq
        %v615 = vshrl.u32 %v614, 7
        %v616 = vsub.s32 0, %v615
        %v617 = vrot.slane %v612, %v616
        %v651 = vunpack.c.l.b16 %v580
        %v652 = vunpack.c.l.b16 %v581
        %v653 = vunpack.c.l.b16 %v582
        %v654 = vunpack.c.l.b16 %v583
        %v655 = vunpack.c.l.b16 %v584
        %v656 = vunpack.c.l.b16 %v585
        %v657 = vunpack.c.l.b16 %v586
        %v658 = vunpack.c.l.b16 %v587
        %v659 = vunpack.c.l.b16 %v588
        %v660 = vunpack.c.l.b16 %v589
        %v661 = vunpack.c.l.b16 %v590
        %v662 = vunpack.c.l.b16 %v591
        %v663 = vunpack.c.l.b16 %v592
        %v664 = vunpack.c.l.b16 %v593
        %v665 = vunpack.c.l.b16 %v594
        %v666 = vunpack.c.l.b16 %v595
        %v667 = vunpack.c.l.b16 %v596
        %v668 = vunpack.c.l.b16 %v597
        %v669 = vunpack.c.l.b16 %v598
        %v670 = vunpack.c.l.b16 %v599
        %v671 = vunpack.c.l.b16 %v600
        %v672 = vunpack.c.l.b16 %v601
        %v673 = vunpack.c.l.b16 %v602
        %v674 = vunpack.c.l.b16 %v603
        %v675 = vunpack.c.l.b16 %v604
        %v676 = vunpack.c.l.b16 %v605
        %v677 = vunpack.c.l.b16 %v606
        %v678 = vunpack.c.l.b16 %v607
        %v679 = vunpack.c.l.b16 %v608
        %v680 = vunpack.c.l.b16 %v609
        %v681 = vunpack.c.l.b16 %v610
        %v682 = vunpack.c.l.b16 %v611
        %v683 = vpack.c.b16 %v652, %v651
        %v684 = vpack.c.b16 %v654, %v653
        %v685 = vpack.c.b16 %v656, %v655
        %v686 = vpack.c.b16 %v658, %v657
        %v687 = vpack.c.b16 %v660, %v659
        %v688 = vpack.c.b16 %v662, %v661
        %v689 = vpack.c.b16 %v664, %v663
        %v690 = vpack.c.b16 %v666, %v665
        %v691 = vpack.c.b16 %v668, %v667
        %v692 = vpack.c.b16 %v670, %v669
        %v693 = vpack.c.b16 %v672, %v671
        %v694 = vpack.c.b16 %v674, %v673
        %v695 = vpack.c.b16 %v676, %v675
        %v696 = vpack.c.b16 %v678, %v677
        %v697 = vpack.c.b16 %v680, %v679
        %v698 = vpack.c.b16 %v682, %v681
        %715 = vmatprep.subr.bf16.mxu0 0
        %716 = vmatpush1.bf16.msra.mxu0 %v690
        %717 = vmatprep.subr.bf16.mxu0 0
        %718 = vmatpush1.bf16.msra.mxu0 %v689
        %719 = vmatprep.subr.bf16.mxu0 0
        %720 = vmatpush1.bf16.msra.mxu0 %v688
        %721 = vmatprep.subr.bf16.mxu0 0
        %722 = vmatpush1.bf16.msra.mxu0 %v687
        %723 = vmatprep.subr.bf16.mxu0 0
        %724 = vmatpush1.bf16.msra.mxu0 %v686
        %725 = vmatprep.subr.bf16.mxu0 0
        %726 = vmatpush1.bf16.msra.mxu0 %v685
        %727 = vmatprep.subr.bf16.mxu0 0
        %728 = vmatpush1.bf16.msra.mxu0 %v684
        %729 = vmatprep.subr.bf16.mxu0 0
        %730 = vmatpush1.bf16.msra.mxu0 %v683
        %731 = vmatprep.subr.bf16.mxu0 0
        %732 = vmatpush2.bf16.msra.mxu0 %v698
        %733 = vmatprep.subr.bf16.mxu0 0
        %734 = vmatpush2.bf16.msra.mxu0 %v697
        %735 = vmatprep.subr.bf16.mxu0 0
        %736 = vmatpush2.bf16.msra.mxu0 %v696
        %737 = vmatprep.subr.bf16.mxu0 0
        %738 = vmatpush2.bf16.msra.mxu0 %v695
        %739 = vmatprep.subr.bf16.mxu0 0
        %740 = vmatpush2.bf16.msra.mxu0 %v694
        %741 = vmatprep.subr.bf16.mxu0 0
        %742 = vmatpush2.bf16.msra.mxu0 %v693
        %743 = vmatprep.subr.bf16.mxu0 0
        %744 = vmatpush2.bf16.msra.mxu0 %v692
        %745 = vmatprep.subr.bf16.mxu0 0
        %746 = vmatpush2.bf16.msra.mxu0 %v691
        %747 = vmatprep.mubr.bf16.mxu0 %v549
        %748 = vmatmul.mubr.bf16.gmra.mxu0 %v548
        %v749 = vpop.f32.mrf.mxu0
        %v750 = vadd.f32 %v617, %v749
        %v751 = vpop.f32.mrf.mxu0
        %v752 = vpop.f32.mrf.mxu0
        %v753 = vadd.f32 %v617, %v752
        %v754 = vpop.f32.mrf.mxu0
        %755 = vmatprep.mubr.bf16.mxu0 %v551
        %756 = vmatmul.mubr.bf16.gmra.mxu0 %v550
        %v757 = vpop.f32.mrf.mxu0
        %v758 = vadd.f32 %v617, %v757
        %v759 = vpop.f32.mrf.mxu0
        %v760 = vpop.f32.mrf.mxu0
        %v761 = vadd.f32 %v617, %v760
        %v762 = vpop.f32.mrf.mxu0
        %763 = vmatprep.mubr.bf16.mxu0 %v553
        %764 = vmatmul.mubr.bf16.gmra.mxu0 %v552
        %v765 = vpop.f32.mrf.mxu0
        %v766 = vadd.f32 %v617, %v765
        %v767 = vpop.f32.mrf.mxu0
        %v768 = vpop.f32.mrf.mxu0
        %v769 = vadd.f32 %v617, %v768
        %v770 = vpop.f32.mrf.mxu0
        %771 = vmatprep.mubr.bf16.mxu0 %v555
        %772 = vmatmul.mubr.bf16.gmra.mxu0 %v554
        %v773 = vpop.f32.mrf.mxu0
        %v774 = vadd.f32 %v617, %v773
        %v775 = vpop.f32.mrf.mxu0
        %v776 = vpop.f32.mrf.mxu0
        %v777 = vadd.f32 %v617, %v776
        %v778 = vpop.f32.mrf.mxu0
        %779 = vmatprep.mubr.bf16.mxu0 %v557
        %780 = vmatmul.mubr.bf16.gmra.mxu0 %v556
        %v781 = vpop.f32.mrf.mxu0
        %v782 = vadd.f32 %v617, %v781
        %v783 = vpop.f32.mrf.mxu0
        %v784 = vpop.f32.mrf.mxu0
        %v785 = vadd.f32 %v617, %v784
        %v786 = vpop.f32.mrf.mxu0
        %787 = vmatprep.mubr.bf16.mxu0 %v559
        %788 = vmatmul.mubr.bf16.gmra.mxu0 %v558
        %v789 = vpop.f32.mrf.mxu0
        %v790 = vadd.f32 %v617, %v789
        %v791 = vpop.f32.mrf.mxu0
        %v792 = vpop.f32.mrf.mxu0
        %v793 = vadd.f32 %v617, %v792
        %v794 = vpop.f32.mrf.mxu0
        %795 = vmatprep.mubr.bf16.mxu0 %v561
        %796 = vmatmul.mubr.bf16.gmra.mxu0 %v560
        %v797 = vpop.f32.mrf.mxu0
        %v798 = vadd.f32 %v617, %v797
        %v799 = vpop.f32.mrf.mxu0
        %v800 = vpop.f32.mrf.mxu0
        %v801 = vadd.f32 %v617, %v800
        %v802 = vpop.f32.mrf.mxu0
        %803 = vmatprep.mubr.bf16.mxu0 %v563
        %804 = vmatmul.mubr.bf16.gmra.mxu0 %v562
        %v805 = vpop.f32.mrf.mxu0
        %v806 = vadd.f32 %v617, %v805
        %v807 = vpop.f32.mrf.mxu0
        %v808 = vpop.f32.mrf.mxu0
        %v809 = vadd.f32 %v617, %v808
        %v810 = vpop.f32.mrf.mxu0
        %811 = vmatprep.mubr.bf16.mxu0 %v565
        %812 = vmatmul.mubr.bf16.gmra.mxu0 %v564
        %v813 = vpop.f32.mrf.mxu0
        %v814 = vadd.f32 %v617, %v813
        %v815 = vpop.f32.mrf.mxu0
        %v816 = vpop.f32.mrf.mxu0
        %v817 = vadd.f32 %v617, %v816
        %v818 = vpop.f32.mrf.mxu0
        %819 = vmatprep.mubr.bf16.mxu0 %v567
        %820 = vmatmul.mubr.bf16.gmra.mxu0 %v566
        %v821 = vpop.f32.mrf.mxu0
        %v822 = vadd.f32 %v617, %v821
        %v823 = vpop.f32.mrf.mxu0
        %v824 = vpop.f32.mrf.mxu0
        %v825 = vadd.f32 %v617, %v824
        %v826 = vpop.f32.mrf.mxu0
        %827 = vmatprep.mubr.bf16.mxu0 %v569
        %828 = vmatmul.mubr.bf16.gmra.mxu0 %v568
        %v829 = vpop.f32.mrf.mxu0
        %v830 = vadd.f32 %v617, %v829
        %v831 = vpop.f32.mrf.mxu0
        %v832 = vpop.f32.mrf.mxu0
        %v833 = vadd.f32 %v617, %v832
        %v834 = vpop.f32.mrf.mxu0
        %835 = vmatprep.mubr.bf16.mxu0 %v571
        %836 = vmatmul.mubr.bf16.gmra.mxu0 %v570
        %v837 = vpop.f32.mrf.mxu0
        %v838 = vadd.f32 %v617, %v837
        %v839 = vpop.f32.mrf.mxu0
        %v840 = vpop.f32.mrf.mxu0
        %v841 = vadd.f32 %v617, %v840
        %v842 = vpop.f32.mrf.mxu0
        %843 = vmatprep.mubr.bf16.mxu0 %v573
        %844 = vmatmul.mubr.bf16.gmra.mxu0 %v572
        %v845 = vpop.f32.mrf.mxu0
        %v846 = vadd.f32 %v617, %v845
        %v847 = vpop.f32.mrf.mxu0
        %v848 = vpop.f32.mrf.mxu0
        %v849 = vadd.f32 %v617, %v848
        %v850 = vpop.f32.mrf.mxu0
        %851 = vmatprep.mubr.bf16.mxu0 %v575
        %852 = vmatmul.mubr.bf16.gmra.mxu0 %v574
        %v853 = vpop.f32.mrf.mxu0
        %v854 = vadd.f32 %v617, %v853
        %v855 = vpop.f32.mrf.mxu0
        %v856 = vpop.f32.mrf.mxu0
        %v857 = vadd.f32 %v617, %v856
        %v858 = vpop.f32.mrf.mxu0
        %859 = vmatprep.mubr.bf16.mxu0 %v577
        %860 = vmatmul.mubr.bf16.gmra.mxu0 %v576
        %v861 = vpop.f32.mrf.mxu0
        %v862 = vadd.f32 %v617, %v861
        %v863 = vpop.f32.mrf.mxu0
        %v864 = vpop.f32.mrf.mxu0
        %v865 = vadd.f32 %v617, %v864
        %v866 = vpop.f32.mrf.mxu0
        %867 = vmatprep.mubr.bf16.mxu0 %v579
        %868 = vmatmul.mubr.bf16.gmra.mxu0 %v578
        %v869 = vpop.f32.mrf.mxu0
        %v870 = vadd.f32 %v617, %v869
        %v871 = vpop.f32.mrf.mxu0
        %v872 = vpop.f32.mrf.mxu0
        %v873 = vadd.f32 %v617, %v872
        %v874 = vpop.f32.mrf.mxu0
        %875 = vdwg.mxu0
        %v876 = vmax.f32 %v750, 0.0
        %v877 = vmax.f32 %v753, 0.0
        %v878 = vmax.f32 %v758, 0.0
        %v879 = vmax.f32 %v761, 0.0
        %v880 = vmax.f32 %v766, 0.0
        %v881 = vmax.f32 %v769, 0.0
        %v882 = vmax.f32 %v774, 0.0
        %v883 = vmax.f32 %v777, 0.0
        %v884 = vmax.f32 %v782, 0.0
        %v885 = vmax.f32 %v785, 0.0
        %v886 = vmax.f32 %v790, 0.0
        %v887 = vmax.f32 %v793, 0.0
        %v888 = vmax.f32 %v798, 0.0
        %v889 = vmax.f32 %v801, 0.0
        %v890 = vmax.f32 %v806, 0.0
        %v891 = vmax.f32 %v809, 0.0
        %v892 = vmax.f32 %v814, 0.0
        %v893 = vmax.f32 %v817, 0.0
        %v894 = vmax.f32 %v822, 0.0
        %v895 = vmax.f32 %v825, 0.0
        %v896 = vmax.f32 %v830, 0.0
        %v897 = vmax.f32 %v833, 0.0
        %v898 = vmax.f32 %v838, 0.0
        %v899 = vmax.f32 %v841, 0.0
        %v900 = vmax.f32 %v846, 0.0
        %v901 = vmax.f32 %v849, 0.0
        %v902 = vmax.f32 %v854, 0.0
        %v903 = vmax.f32 %v857, 0.0
        %v904 = vmax.f32 %v862, 0.0
        %v905 = vmax.f32 %v865, 0.0
        %v906 = vmax.f32 %v870, 0.0
        %v907 = vmax.f32 %v873, 0.0
        %v908 = vpack.c.bf16 %v877, %v876
        %v909 = vpack.c.bf16 %v879, %v878
        %v910 = vpack.c.bf16 %v881, %v880
        %v911 = vpack.c.bf16 %v883, %v882
        %v912 = vpack.c.bf16 %v885, %v884
        %v913 = vpack.c.bf16 %v887, %v886
        %v914 = vpack.c.bf16 %v889, %v888
        %v915 = vpack.c.bf16 %v891, %v890
        %v916 = vpack.c.bf16 %v893, %v892
        %v917 = vpack.c.bf16 %v895, %v894
        %v918 = vpack.c.bf16 %v897, %v896
        %v919 = vpack.c.bf16 %v899, %v898
        %v920 = vpack.c.bf16 %v901, %v900
        %v921 = vpack.c.bf16 %v903, %v902
        %v922 = vpack.c.bf16 %v905, %v904
        %v923 = vpack.c.bf16 %v907, %v906
        %v924 = vld [vmem:[#allocation6] sm:$0xf]
        %v925 = vld [vmem:[#allocation6 + $0x4] sm:$0xf]
        %v926 = vld [vmem:[#allocation6 + $0x8] sm:$0xf]
        %v927 = vld [vmem:[#allocation6 + $0xc] sm:$0xf]
        %v928 = vld [vmem:[#allocation6 + $0x10] sm:$0xf]
        %v929 = vld [vmem:[#allocation6 + $0x14] sm:$0xf]
        %v930 = vld [vmem:[#allocation6 + $0x18] sm:$0xf]
        %v931 = vld [vmem:[#allocation6 + $0x1c] sm:$0xf]
        %v932 = vld [vmem:[#allocation6 + $0x20] sm:$0xf]
        %v933 = vld [vmem:[#allocation6 + $0x24] sm:$0xf]
        %v934 = vld [vmem:[#allocation6 + $0x28] sm:$0xf]
        %v935 = vld [vmem:[#allocation6 + $0x2c] sm:$0xf]
        %v936 = vld [vmem:[#allocation6 + $0x30] sm:$0xf]
        %v937 = vld [vmem:[#allocation6 + $0x34] sm:$0xf]
        %v938 = vld [vmem:[#allocation6 + $0x38] sm:$0xf]
        %v939 = vld [vmem:[#allocation6 + $0x3c] sm:$0xf]
        %v940 = vld [vmem:[%s4] sm:$0x1]
        %v942 = vlaneseq
        %v943 = vshrl.u32 %v942, 7
        %v944 = vsub.s32 0, %v943
        %v945 = vrot.slane %v940, %v944
        %v963 = vunpack.c.l.b16 %v924
        %v964 = vunpack.c.l.b16 %v925
        %v965 = vunpack.c.l.b16 %v926
        %v966 = vunpack.c.l.b16 %v927
        %v967 = vunpack.c.l.b16 %v928
        %v968 = vunpack.c.l.b16 %v929
        %v969 = vunpack.c.l.b16 %v930
        %v970 = vunpack.c.l.b16 %v931
        %v971 = vunpack.c.l.b16 %v932
        %v972 = vunpack.c.l.b16 %v933
        %v973 = vunpack.c.l.b16 %v934
        %v974 = vunpack.c.l.b16 %v935
        %v975 = vunpack.c.l.b16 %v936
        %v976 = vunpack.c.l.b16 %v937
        %v977 = vunpack.c.l.b16 %v938
        %v978 = vunpack.c.l.b16 %v939
        %v979 = vpack.c.b16 %v964, %v963
        %v980 = vpack.c.b16 %v966, %v965
        %v981 = vpack.c.b16 %v968, %v967
        %v982 = vpack.c.b16 %v970, %v969
        %v983 = vpack.c.b16 %v972, %v971
        %v984 = vpack.c.b16 %v974, %v973
        %v985 = vpack.c.b16 %v976, %v975
        %v986 = vpack.c.b16 %v978, %v977
        %995 = vmatprep.subr.bf16.mxu0 0
        %996 = vmatpush1.bf16.msra.mxu0 %v986
        %997 = vmatprep.subr.bf16.mxu0 0
        %998 = vmatpush1.bf16.msra.mxu0 %v985
        %999 = vmatprep.subr.bf16.mxu0 0
        %1000 = vmatpush1.bf16.msra.mxu0 %v984
        %1001 = vmatprep.subr.bf16.mxu0 0
        %1002 = vmatpush1.bf16.msra.mxu0 %v983
        %1003 = vmatprep.subr.bf16.mxu0 0
        %1004 = vmatpush1.bf16.msra.mxu0 %v982
        %1005 = vmatprep.subr.bf16.mxu0 0
        %1006 = vmatpush1.bf16.msra.mxu0 %v981
        %1007 = vmatprep.subr.bf16.mxu0 0
        %1008 = vmatpush1.bf16.msra.mxu0 %v980
        %1009 = vmatprep.subr.bf16.mxu0 0
        %1010 = vmatpush1.bf16.msra.mxu0 %v979
        %1011 = vmatprep.subr.bf16.mxu0 0
        %1012 = vmatpush2.bf16.msra.mxu0 0
        %1013 = vmatprep.subr.bf16.mxu0 0
        %1014 = vmatpush2.bf16.msra.mxu0 0
        %1015 = vmatprep.subr.bf16.mxu0 0
        %1016 = vmatpush2.bf16.msra.mxu0 0
        %1017 = vmatprep.subr.bf16.mxu0 0
        %1018 = vmatpush2.bf16.msra.mxu0 0
        %1019 = vmatprep.subr.bf16.mxu0 0
        %1020 = vmatpush2.bf16.msra.mxu0 0
        %1021 = vmatprep.subr.bf16.mxu0 0
        %1022 = vmatpush2.bf16.msra.mxu0 0
        %1023 = vmatprep.subr.bf16.mxu0 0
        %1024 = vmatpush2.bf16.msra.mxu0 0
        %1025 = vmatprep.subr.bf16.mxu0 0
        %1026 = vmatpush2.bf16.msra.mxu0 0
        %1027 = vmatprep.mubr.bf16.mxu0 0
        %1028 = vmatmul.mubr.bf16.gmra.mxu0 %v908
        %v1029 = vpop.f32.mrf.mxu0
        %v1030 = vadd.f32 %v945, %v1029
        %v1031 = vpop.f32.mrf.mxu0
        %v1032 = vpop.f32.mrf.mxu0
        %v1033 = vadd.f32 %v945, %v1032
        %v1034 = vpop.f32.mrf.mxu0
        %1035 = vmatprep.mubr.bf16.mxu0 0
        %1036 = vmatmul.mubr.bf16.gmra.mxu0 %v909
        %v1037 = vpop.f32.mrf.mxu0
        %v1038 = vadd.f32 %v945, %v1037
        %v1039 = vpop.f32.mrf.mxu0
        %v1040 = vpop.f32.mrf.mxu0
        %v1041 = vadd.f32 %v945, %v1040
        %v1042 = vpop.f32.mrf.mxu0
        %1043 = vmatprep.mubr.bf16.mxu0 0
        %1044 = vmatmul.mubr.bf16.gmra.mxu0 %v910
        %v1045 = vpop.f32.mrf.mxu0
        %v1046 = vadd.f32 %v945, %v1045
        %v1047 = vpop.f32.mrf.mxu0
        %v1048 = vpop.f32.mrf.mxu0
        %v1049 = vadd.f32 %v945, %v1048
        %v1050 = vpop.f32.mrf.mxu0
        %1051 = vmatprep.mubr.bf16.mxu0 0
        %1052 = vmatmul.mubr.bf16.gmra.mxu0 %v911
        %v1053 = vpop.f32.mrf.mxu0
        %v1054 = vadd.f32 %v945, %v1053
        %v1055 = vpop.f32.mrf.mxu0
        %v1056 = vpop.f32.mrf.mxu0
        %v1057 = vadd.f32 %v945, %v1056
        %v1058 = vpop.f32.mrf.mxu0
        %1059 = vmatprep.mubr.bf16.mxu0 0
        %1060 = vmatmul.mubr.bf16.gmra.mxu0 %v912
        %v1061 = vpop.f32.mrf.mxu0
        %v1062 = vadd.f32 %v945, %v1061
        %v1063 = vpop.f32.mrf.mxu0
        %v1064 = vpop.f32.mrf.mxu0
        %v1065 = vadd.f32 %v945, %v1064
        %v1066 = vpop.f32.mrf.mxu0
        %1067 = vmatprep.mubr.bf16.mxu0 0
        %1068 = vmatmul.mubr.bf16.gmra.mxu0 %v913
        %v1069 = vpop.f32.mrf.mxu0
        %v1070 = vadd.f32 %v945, %v1069
        %v1071 = vpop.f32.mrf.mxu0
        %v1072 = vpop.f32.mrf.mxu0
        %v1073 = vadd.f32 %v945, %v1072
        %v1074 = vpop.f32.mrf.mxu0
        %1075 = vmatprep.mubr.bf16.mxu0 0
        %1076 = vmatmul.mubr.bf16.gmra.mxu0 %v914
        %v1077 = vpop.f32.mrf.mxu0
        %v1078 = vadd.f32 %v945, %v1077
        %v1079 = vpop.f32.mrf.mxu0
        %v1080 = vpop.f32.mrf.mxu0
        %v1081 = vadd.f32 %v945, %v1080
        %v1082 = vpop.f32.mrf.mxu0
        %1083 = vmatprep.mubr.bf16.mxu0 0
        %1084 = vmatmul.mubr.bf16.gmra.mxu0 %v915
        %v1085 = vpop.f32.mrf.mxu0
        %v1086 = vadd.f32 %v945, %v1085
        %v1087 = vpop.f32.mrf.mxu0
        %v1088 = vpop.f32.mrf.mxu0
        %v1089 = vadd.f32 %v945, %v1088
        %v1090 = vpop.f32.mrf.mxu0
        %1091 = vmatprep.mubr.bf16.mxu0 0
        %1092 = vmatmul.mubr.bf16.gmra.mxu0 %v916
        %v1093 = vpop.f32.mrf.mxu0
        %v1094 = vadd.f32 %v945, %v1093
        %v1095 = vpop.f32.mrf.mxu0
        %v1096 = vpop.f32.mrf.mxu0
        %v1097 = vadd.f32 %v945, %v1096
        %v1098 = vpop.f32.mrf.mxu0
        %1099 = vmatprep.mubr.bf16.mxu0 0
        %1100 = vmatmul.mubr.bf16.gmra.mxu0 %v917
        %v1101 = vpop.f32.mrf.mxu0
        %v1102 = vadd.f32 %v945, %v1101
        %v1103 = vpop.f32.mrf.mxu0
        %v1104 = vpop.f32.mrf.mxu0
        %v1105 = vadd.f32 %v945, %v1104
        %v1106 = vpop.f32.mrf.mxu0
        %1107 = vmatprep.mubr.bf16.mxu0 0
        %1108 = vmatmul.mubr.bf16.gmra.mxu0 %v918
        %v1109 = vpop.f32.mrf.mxu0
        %v1110 = vadd.f32 %v945, %v1109
        %v1111 = vpop.f32.mrf.mxu0
        %v1112 = vpop.f32.mrf.mxu0
        %v1113 = vadd.f32 %v945, %v1112
        %v1114 = vpop.f32.mrf.mxu0
        %1115 = vmatprep.mubr.bf16.mxu0 0
        %1116 = vmatmul.mubr.bf16.gmra.mxu0 %v919
        %v1117 = vpop.f32.mrf.mxu0
        %v1118 = vadd.f32 %v945, %v1117
        %v1119 = vpop.f32.mrf.mxu0
        %v1120 = vpop.f32.mrf.mxu0
        %v1121 = vadd.f32 %v945, %v1120
        %v1122 = vpop.f32.mrf.mxu0
        %1123 = vmatprep.mubr.bf16.mxu0 0
        %1124 = vmatmul.mubr.bf16.gmra.mxu0 %v920
        %v1125 = vpop.f32.mrf.mxu0
        %v1126 = vadd.f32 %v945, %v1125
        %v1127 = vpop.f32.mrf.mxu0
        %v1128 = vpop.f32.mrf.mxu0
        %v1129 = vadd.f32 %v945, %v1128
        %v1130 = vpop.f32.mrf.mxu0
        %1131 = vmatprep.mubr.bf16.mxu0 0
        %1132 = vmatmul.mubr.bf16.gmra.mxu0 %v921
        %v1133 = vpop.f32.mrf.mxu0
        %v1134 = vadd.f32 %v945, %v1133
        %v1135 = vpop.f32.mrf.mxu0
        %v1136 = vpop.f32.mrf.mxu0
        %v1137 = vadd.f32 %v945, %v1136
        %v1138 = vpop.f32.mrf.mxu0
        %1139 = vmatprep.mubr.bf16.mxu0 0
        %1140 = vmatmul.mubr.bf16.gmra.mxu0 %v922
        %v1141 = vpop.f32.mrf.mxu0
        %v1142 = vadd.f32 %v945, %v1141
        %v1143 = vpop.f32.mrf.mxu0
        %v1144 = vpop.f32.mrf.mxu0
        %v1145 = vadd.f32 %v945, %v1144
        %v1146 = vpop.f32.mrf.mxu0
        %1147 = vmatprep.mubr.bf16.mxu0 0
        %1148 = vmatmul.mubr.bf16.gmra.mxu0 %v923
        %v1149 = vpop.f32.mrf.mxu0
        %v1150 = vadd.f32 %v945, %v1149
        %v1151 = vpop.f32.mrf.mxu0
        %v1152 = vpop.f32.mrf.mxu0
        %v1153 = vadd.f32 %v945, %v1152
        %v1154 = vpop.f32.mrf.mxu0
        %1155 = vdwg.mxu0
        %v1156 = vmax.f32 %v1030, 0.0
        %v1157 = vmax.f32 %v1033, 0.0
        %v1158 = vmax.f32 %v1038, 0.0
        %v1159 = vmax.f32 %v1041, 0.0
        %v1160 = vmax.f32 %v1046, 0.0
        %v1161 = vmax.f32 %v1049, 0.0
        %v1162 = vmax.f32 %v1054, 0.0
        %v1163 = vmax.f32 %v1057, 0.0
        %v1164 = vmax.f32 %v1062, 0.0
        %v1165 = vmax.f32 %v1065, 0.0
        %v1166 = vmax.f32 %v1070, 0.0
        %v1167 = vmax.f32 %v1073, 0.0
        %v1168 = vmax.f32 %v1078, 0.0
        %v1169 = vmax.f32 %v1081, 0.0
        %v1170 = vmax.f32 %v1086, 0.0
        %v1171 = vmax.f32 %v1089, 0.0
        %v1172 = vmax.f32 %v1094, 0.0
        %v1173 = vmax.f32 %v1097, 0.0
        %v1174 = vmax.f32 %v1102, 0.0
        %v1175 = vmax.f32 %v1105, 0.0
        %v1176 = vmax.f32 %v1110, 0.0
        %v1177 = vmax.f32 %v1113, 0.0
        %v1178 = vmax.f32 %v1118, 0.0
        %v1179 = vmax.f32 %v1121, 0.0
        %v1180 = vmax.f32 %v1126, 0.0
        %v1181 = vmax.f32 %v1129, 0.0
        %v1182 = vmax.f32 %v1134, 0.0
        %v1183 = vmax.f32 %v1137, 0.0
        %v1184 = vmax.f32 %v1142, 0.0
        %v1185 = vmax.f32 %v1145, 0.0
        %v1186 = vmax.f32 %v1150, 0.0
        %v1187 = vmax.f32 %v1153, 0.0
        %v1188 = vpack.c.bf16 %v1157, %v1156
        %v1189 = vpack.c.bf16 %v1159, %v1158
        %v1190 = vpack.c.bf16 %v1161, %v1160
        %v1191 = vpack.c.bf16 %v1163, %v1162
        %v1192 = vpack.c.bf16 %v1165, %v1164
        %v1193 = vpack.c.bf16 %v1167, %v1166
        %v1194 = vpack.c.bf16 %v1169, %v1168
        %v1195 = vpack.c.bf16 %v1171, %v1170
        %v1196 = vpack.c.bf16 %v1173, %v1172
        %v1197 = vpack.c.bf16 %v1175, %v1174
        %v1198 = vpack.c.bf16 %v1177, %v1176
        %v1199 = vpack.c.bf16 %v1179, %v1178
        %v1200 = vpack.c.bf16 %v1181, %v1180
        %v1201 = vpack.c.bf16 %v1183, %v1182
        %v1202 = vpack.c.bf16 %v1185, %v1184
        %v1203 = vpack.c.bf16 %v1187, %v1186
        %v1204 = vld [vmem:[#allocation7] sm:$0xf]
        %v1205 = vld [vmem:[#allocation7 + $0x4] sm:$0xf]
        %v1206 = vld [vmem:[#allocation7 + $0x8] sm:$0xf]
        %v1207 = vld [vmem:[#allocation7 + $0xc] sm:$0xf]
        %v1208 = vld [vmem:[#allocation7 + $0x10] sm:$0xf]
        %v1209 = vld [vmem:[#allocation7 + $0x14] sm:$0xf]
        %v1210 = vld [vmem:[#allocation7 + $0x18] sm:$0xf]
        %v1211 = vld [vmem:[#allocation7 + $0x1c] sm:$0xf]
        %v1212 = vld [vmem:[#allocation7 + $0x20] sm:$0xf]
        %v1213 = vld [vmem:[#allocation7 + $0x24] sm:$0xf]
        %v1214 = vld [vmem:[#allocation7 + $0x28] sm:$0xf]
        %v1215 = vld [vmem:[#allocation7 + $0x2c] sm:$0xf]
        %v1216 = vld [vmem:[#allocation7 + $0x30] sm:$0xf]
        %v1217 = vld [vmem:[#allocation7 + $0x34] sm:$0xf]
        %v1218 = vld [vmem:[#allocation7 + $0x38] sm:$0xf]
        %v1219 = vld [vmem:[#allocation7 + $0x3c] sm:$0xf]
        %v1220 = vld [vmem:[%s6] sm:$0x1]
        %v1222 = vlaneseq
        %v1223 = vshrl.u32 %v1222, 7
        %v1224 = vsub.s32 0, %v1223
        %v1225 = vrot.slane %v1220, %v1224
        %v1243 = vunpack.c.l.b16 %v1204
        %v1244 = vunpack.c.l.b16 %v1205
        %v1245 = vunpack.c.l.b16 %v1206
        %v1246 = vunpack.c.l.b16 %v1207
        %v1247 = vunpack.c.l.b16 %v1208
        %v1248 = vunpack.c.l.b16 %v1209
        %v1249 = vunpack.c.l.b16 %v1210
        %v1250 = vunpack.c.l.b16 %v1211
        %v1251 = vunpack.c.l.b16 %v1212
        %v1252 = vunpack.c.l.b16 %v1213
        %v1253 = vunpack.c.l.b16 %v1214
        %v1254 = vunpack.c.l.b16 %v1215
        %v1255 = vunpack.c.l.b16 %v1216
        %v1256 = vunpack.c.l.b16 %v1217
        %v1257 = vunpack.c.l.b16 %v1218
        %v1258 = vunpack.c.l.b16 %v1219
        %v1259 = vpack.c.b16 %v1244, %v1243
        %v1260 = vpack.c.b16 %v1246, %v1245
        %v1261 = vpack.c.b16 %v1248, %v1247
        %v1262 = vpack.c.b16 %v1250, %v1249
        %v1263 = vpack.c.b16 %v1252, %v1251
        %v1264 = vpack.c.b16 %v1254, %v1253
        %v1265 = vpack.c.b16 %v1256, %v1255
        %v1266 = vpack.c.b16 %v1258, %v1257
        %1275 = vmatprep.subr.bf16.mxu0 0
        %1276 = vmatpush1.bf16.msra.mxu0 %v1266
        %1277 = vmatprep.subr.bf16.mxu0 0
        %1278 = vmatpush1.bf16.msra.mxu0 %v1265
        %1279 = vmatprep.subr.bf16.mxu0 0
        %1280 = vmatpush1.bf16.msra.mxu0 %v1264
        %1281 = vmatprep.subr.bf16.mxu0 0
        %1282 = vmatpush1.bf16.msra.mxu0 %v1263
        %1283 = vmatprep.subr.bf16.mxu0 0
        %1284 = vmatpush1.bf16.msra.mxu0 %v1262
        %1285 = vmatprep.subr.bf16.mxu0 0
        %1286 = vmatpush1.bf16.msra.mxu0 %v1261
        %1287 = vmatprep.subr.bf16.mxu0 0
        %1288 = vmatpush1.bf16.msra.mxu0 %v1260
        %1289 = vmatprep.subr.bf16.mxu0 0
        %1290 = vmatpush1.bf16.msra.mxu0 %v1259
        %1291 = vmatprep.subr.bf16.mxu0 0
        %1292 = vmatpush2.bf16.msra.mxu0 0
        %1293 = vmatprep.subr.bf16.mxu0 0
        %1294 = vmatpush2.bf16.msra.mxu0 0
        %1295 = vmatprep.subr.bf16.mxu0 0
        %1296 = vmatpush2.bf16.msra.mxu0 0
        %1297 = vmatprep.subr.bf16.mxu0 0
        %1298 = vmatpush2.bf16.msra.mxu0 0
        %1299 = vmatprep.subr.bf16.mxu0 0
        %1300 = vmatpush2.bf16.msra.mxu0 0
        %1301 = vmatprep.subr.bf16.mxu0 0
        %1302 = vmatpush2.bf16.msra.mxu0 0
        %1303 = vmatprep.subr.bf16.mxu0 0
        %1304 = vmatpush2.bf16.msra.mxu0 0
        %1305 = vmatprep.subr.bf16.mxu0 0
        %1306 = vmatpush2.bf16.msra.mxu0 0
        %1307 = vmatprep.mubr.bf16.mxu0 0
        %1308 = vmatmul.mubr.bf16.gmra.mxu0 %v1188
        %v1309 = vpop.f32.mrf.mxu0
        %v1310 = vadd.f32 %v1225, %v1309
        %v1311 = vpop.f32.mrf.mxu0
        %v1312 = vpop.f32.mrf.mxu0
        %v1313 = vadd.f32 %v1225, %v1312
        %v1314 = vpop.f32.mrf.mxu0
        %1315 = vmatprep.mubr.bf16.mxu0 0
        %1316 = vmatmul.mubr.bf16.gmra.mxu0 %v1189
        %v1317 = vpop.f32.mrf.mxu0
        %v1318 = vadd.f32 %v1225, %v1317
        %v1319 = vpop.f32.mrf.mxu0
        %v1320 = vpop.f32.mrf.mxu0
        %v1321 = vadd.f32 %v1225, %v1320
        %v1322 = vpop.f32.mrf.mxu0
        %1323 = vmatprep.mubr.bf16.mxu0 0
        %1324 = vmatmul.mubr.bf16.gmra.mxu0 %v1190
        %v1325 = vpop.f32.mrf.mxu0
        %v1326 = vadd.f32 %v1225, %v1325
        %v1327 = vpop.f32.mrf.mxu0
        %v1328 = vpop.f32.mrf.mxu0
        %v1329 = vadd.f32 %v1225, %v1328
        %v1330 = vpop.f32.mrf.mxu0
        %1331 = vmatprep.mubr.bf16.mxu0 0
        %1332 = vmatmul.mubr.bf16.gmra.mxu0 %v1191
        %v1333 = vpop.f32.mrf.mxu0
        %v1334 = vadd.f32 %v1225, %v1333
        %v1335 = vpop.f32.mrf.mxu0
        %v1336 = vpop.f32.mrf.mxu0
        %v1337 = vadd.f32 %v1225, %v1336
        %v1338 = vpop.f32.mrf.mxu0
        %1339 = vmatprep.mubr.bf16.mxu0 0
        %1340 = vmatmul.mubr.bf16.gmra.mxu0 %v1192
        %v1341 = vpop.f32.mrf.mxu0
        %v1342 = vadd.f32 %v1225, %v1341
        %v1343 = vpop.f32.mrf.mxu0
        %v1344 = vpop.f32.mrf.mxu0
        %v1345 = vadd.f32 %v1225, %v1344
        %v1346 = vpop.f32.mrf.mxu0
        %1347 = vmatprep.mubr.bf16.mxu0 0
        %1348 = vmatmul.mubr.bf16.gmra.mxu0 %v1193
        %v1349 = vpop.f32.mrf.mxu0
        %v1350 = vadd.f32 %v1225, %v1349
        %v1351 = vpop.f32.mrf.mxu0
        %v1352 = vpop.f32.mrf.mxu0
        %v1353 = vadd.f32 %v1225, %v1352
        %v1354 = vpop.f32.mrf.mxu0
        %1355 = vmatprep.mubr.bf16.mxu0 0
        %1356 = vmatmul.mubr.bf16.gmra.mxu0 %v1194
        %v1357 = vpop.f32.mrf.mxu0
        %v1358 = vadd.f32 %v1225, %v1357
        %v1359 = vpop.f32.mrf.mxu0
        %v1360 = vpop.f32.mrf.mxu0
        %v1361 = vadd.f32 %v1225, %v1360
        %v1362 = vpop.f32.mrf.mxu0
        %1363 = vmatprep.mubr.bf16.mxu0 0
        %1364 = vmatmul.mubr.bf16.gmra.mxu0 %v1195
        %v1365 = vpop.f32.mrf.mxu0
        %v1366 = vadd.f32 %v1225, %v1365
        %v1367 = vpop.f32.mrf.mxu0
        %v1368 = vpop.f32.mrf.mxu0
        %v1369 = vadd.f32 %v1225, %v1368
        %v1370 = vpop.f32.mrf.mxu0
        %1371 = vmatprep.mubr.bf16.mxu0 0
        %1372 = vmatmul.mubr.bf16.gmra.mxu0 %v1196
        %v1373 = vpop.f32.mrf.mxu0
        %v1374 = vadd.f32 %v1225, %v1373
        %v1375 = vpop.f32.mrf.mxu0
        %v1376 = vpop.f32.mrf.mxu0
        %v1377 = vadd.f32 %v1225, %v1376
        %v1378 = vpop.f32.mrf.mxu0
        %1379 = vmatprep.mubr.bf16.mxu0 0
        %1380 = vmatmul.mubr.bf16.gmra.mxu0 %v1197
        %v1381 = vpop.f32.mrf.mxu0
        %v1382 = vadd.f32 %v1225, %v1381
        %v1383 = vpop.f32.mrf.mxu0
        %v1384 = vpop.f32.mrf.mxu0
        %v1385 = vadd.f32 %v1225, %v1384
        %v1386 = vpop.f32.mrf.mxu0
        %1387 = vmatprep.mubr.bf16.mxu0 0
        %1388 = vmatmul.mubr.bf16.gmra.mxu0 %v1198
        %v1389 = vpop.f32.mrf.mxu0
        %v1390 = vadd.f32 %v1225, %v1389
        %v1391 = vpop.f32.mrf.mxu0
        %v1392 = vpop.f32.mrf.mxu0
        %v1393 = vadd.f32 %v1225, %v1392
        %v1394 = vpop.f32.mrf.mxu0
        %1395 = vmatprep.mubr.bf16.mxu0 0
        %1396 = vmatmul.mubr.bf16.gmra.mxu0 %v1199
        %v1397 = vpop.f32.mrf.mxu0
        %v1398 = vadd.f32 %v1225, %v1397
        %v1399 = vpop.f32.mrf.mxu0
        %v1400 = vpop.f32.mrf.mxu0
        %v1401 = vadd.f32 %v1225, %v1400
        %v1402 = vpop.f32.mrf.mxu0
        %1403 = vmatprep.mubr.bf16.mxu0 0
        %1404 = vmatmul.mubr.bf16.gmra.mxu0 %v1200
        %v1405 = vpop.f32.mrf.mxu0
        %v1406 = vadd.f32 %v1225, %v1405
        %v1407 = vpop.f32.mrf.mxu0
        %v1408 = vpop.f32.mrf.mxu0
        %v1409 = vadd.f32 %v1225, %v1408
        %v1410 = vpop.f32.mrf.mxu0
        %1411 = vmatprep.mubr.bf16.mxu0 0
        %1412 = vmatmul.mubr.bf16.gmra.mxu0 %v1201
        %v1413 = vpop.f32.mrf.mxu0
        %v1414 = vadd.f32 %v1225, %v1413
        %v1415 = vpop.f32.mrf.mxu0
        %v1416 = vpop.f32.mrf.mxu0
        %v1417 = vadd.f32 %v1225, %v1416
        %v1418 = vpop.f32.mrf.mxu0
        %1419 = vmatprep.mubr.bf16.mxu0 0
        %1420 = vmatmul.mubr.bf16.gmra.mxu0 %v1202
        %v1421 = vpop.f32.mrf.mxu0
        %v1422 = vadd.f32 %v1225, %v1421
        %v1423 = vpop.f32.mrf.mxu0
        %v1424 = vpop.f32.mrf.mxu0
        %v1425 = vadd.f32 %v1225, %v1424
        %v1426 = vpop.f32.mrf.mxu0
        %1427 = vmatprep.mubr.bf16.mxu0 0
        %1428 = vmatmul.mubr.bf16.gmra.mxu0 %v1203
        %v1429 = vpop.f32.mrf.mxu0
        %v1430 = vadd.f32 %v1225, %v1429
        %v1431 = vpop.f32.mrf.mxu0
        %v1432 = vpop.f32.mrf.mxu0
        %v1433 = vadd.f32 %v1225, %v1432
        %v1434 = vpop.f32.mrf.mxu0
        %1435 = vdwg.mxu0
        %v1436 = vmax.f32 %v1310, 0.0
        %v1437 = vmax.f32 %v1313, 0.0
        %v1438 = vmax.f32 %v1318, 0.0
        %v1439 = vmax.f32 %v1321, 0.0
        %v1440 = vmax.f32 %v1326, 0.0
        %v1441 = vmax.f32 %v1329, 0.0
        %v1442 = vmax.f32 %v1334, 0.0
        %v1443 = vmax.f32 %v1337, 0.0
        %v1444 = vmax.f32 %v1342, 0.0
        %v1445 = vmax.f32 %v1345, 0.0
        %v1446 = vmax.f32 %v1350, 0.0
        %v1447 = vmax.f32 %v1353, 0.0
        %v1448 = vmax.f32 %v1358, 0.0
        %v1449 = vmax.f32 %v1361, 0.0
        %v1450 = vmax.f32 %v1366, 0.0
        %v1451 = vmax.f32 %v1369, 0.0
        %v1452 = vmax.f32 %v1374, 0.0
        %v1453 = vmax.f32 %v1377, 0.0
        %v1454 = vmax.f32 %v1382, 0.0
        %v1455 = vmax.f32 %v1385, 0.0
        %v1456 = vmax.f32 %v1390, 0.0
        %v1457 = vmax.f32 %v1393, 0.0
        %v1458 = vmax.f32 %v1398, 0.0
        %v1459 = vmax.f32 %v1401, 0.0
        %v1460 = vmax.f32 %v1406, 0.0
        %v1461 = vmax.f32 %v1409, 0.0
        %v1462 = vmax.f32 %v1414, 0.0
        %v1463 = vmax.f32 %v1417, 0.0
        %v1464 = vmax.f32 %v1422, 0.0
        %v1465 = vmax.f32 %v1425, 0.0
        %v1466 = vmax.f32 %v1430, 0.0
        %v1467 = vmax.f32 %v1433, 0.0
        %v1468 = vpack.c.bf16 %v1437, %v1436
        %v1469 = vpack.c.bf16 %v1439, %v1438
        %v1470 = vpack.c.bf16 %v1441, %v1440
        %v1471 = vpack.c.bf16 %v1443, %v1442
        %v1472 = vpack.c.bf16 %v1445, %v1444
        %v1473 = vpack.c.bf16 %v1447, %v1446
        %v1474 = vpack.c.bf16 %v1449, %v1448
        %v1475 = vpack.c.bf16 %v1451, %v1450
        %v1476 = vpack.c.bf16 %v1453, %v1452
        %v1477 = vpack.c.bf16 %v1455, %v1454
        %v1478 = vpack.c.bf16 %v1457, %v1456
        %v1479 = vpack.c.bf16 %v1459, %v1458
        %v1480 = vpack.c.bf16 %v1461, %v1460
        %v1481 = vpack.c.bf16 %v1463, %v1462
        %v1482 = vpack.c.bf16 %v1465, %v1464
        %v1483 = vpack.c.bf16 %v1467, %v1466
        %v1484 = vld [vmem:[#allocation9] sm:$0xf]
        %v1485 = vld [vmem:[#allocation9 + $0x4] sm:$0xf]
        %v1486 = vld [vmem:[#allocation9 + $0x8] sm:$0xf]
        %v1487 = vld [vmem:[#allocation9 + $0xc] sm:$0xf]
        %v1488 = vld [vmem:[#allocation9 + $0x10] sm:$0xf]
        %v1489 = vld [vmem:[#allocation9 + $0x14] sm:$0xf]
        %v1490 = vld [vmem:[#allocation9 + $0x18] sm:$0xf]
        %v1491 = vld [vmem:[#allocation9 + $0x1c] sm:$0xf]
        %v1492 = vld [vmem:[#allocation9 + $0x20] sm:$0xf]
        %v1493 = vld [vmem:[#allocation9 + $0x24] sm:$0xf]
        %v1494 = vld [vmem:[#allocation9 + $0x28] sm:$0xf]
        %v1495 = vld [vmem:[#allocation9 + $0x2c] sm:$0xf]
        %v1496 = vld [vmem:[#allocation9 + $0x30] sm:$0xf]
        %v1497 = vld [vmem:[#allocation9 + $0x34] sm:$0xf]
        %v1498 = vld [vmem:[#allocation9 + $0x38] sm:$0xf]
        %v1499 = vld [vmem:[#allocation9 + $0x3c] sm:$0xf]
        %v1500 = vld [vmem:[%s8] sm:$0x1]
        %v1502 = vlaneseq
        %v1503 = vshrl.u32 %v1502, 7
        %v1504 = vsub.s32 0, %v1503
        %v1505 = vrot.slane %v1500, %v1504
        %v1523 = vunpack.c.l.b16 %v1484
        %v1524 = vunpack.c.l.b16 %v1485
        %v1525 = vunpack.c.l.b16 %v1486
        %v1526 = vunpack.c.l.b16 %v1487
        %v1527 = vunpack.c.l.b16 %v1488
        %v1528 = vunpack.c.l.b16 %v1489
        %v1529 = vunpack.c.l.b16 %v1490
        %v1530 = vunpack.c.l.b16 %v1491
        %v1531 = vunpack.c.l.b16 %v1492
        %v1532 = vunpack.c.l.b16 %v1493
        %v1533 = vunpack.c.l.b16 %v1494
        %v1534 = vunpack.c.l.b16 %v1495
        %v1535 = vunpack.c.l.b16 %v1496
        %v1536 = vunpack.c.l.b16 %v1497
        %v1537 = vunpack.c.l.b16 %v1498
        %v1538 = vunpack.c.l.b16 %v1499
        %v1539 = vpack.c.b16 %v1524, %v1523
        %v1540 = vpack.c.b16 %v1526, %v1525
        %v1541 = vpack.c.b16 %v1528, %v1527
        %v1542 = vpack.c.b16 %v1530, %v1529
        %v1543 = vpack.c.b16 %v1532, %v1531
        %v1544 = vpack.c.b16 %v1534, %v1533
        %v1545 = vpack.c.b16 %v1536, %v1535
        %v1546 = vpack.c.b16 %v1538, %v1537
        %1555 = vmatprep.subr.bf16.mxu0 0
        %1556 = vmatpush1.bf16.msra.mxu0 %v1546
        %1557 = vmatprep.subr.bf16.mxu0 0
        %1558 = vmatpush1.bf16.msra.mxu0 %v1545
        %1559 = vmatprep.subr.bf16.mxu0 0
        %1560 = vmatpush1.bf16.msra.mxu0 %v1544
        %1561 = vmatprep.subr.bf16.mxu0 0
        %1562 = vmatpush1.bf16.msra.mxu0 %v1543
        %1563 = vmatprep.subr.bf16.mxu0 0
        %1564 = vmatpush1.bf16.msra.mxu0 %v1542
        %1565 = vmatprep.subr.bf16.mxu0 0
        %1566 = vmatpush1.bf16.msra.mxu0 %v1541
        %1567 = vmatprep.subr.bf16.mxu0 0
        %1568 = vmatpush1.bf16.msra.mxu0 %v1540
        %1569 = vmatprep.subr.bf16.mxu0 0
        %1570 = vmatpush1.bf16.msra.mxu0 %v1539
        %1571 = vmatprep.subr.bf16.mxu0 0
        %1572 = vmatpush2.bf16.msra.mxu0 0
        %1573 = vmatprep.subr.bf16.mxu0 0
        %1574 = vmatpush2.bf16.msra.mxu0 0
        %1575 = vmatprep.subr.bf16.mxu0 0
        %1576 = vmatpush2.bf16.msra.mxu0 0
        %1577 = vmatprep.subr.bf16.mxu0 0
        %1578 = vmatpush2.bf16.msra.mxu0 0
        %1579 = vmatprep.subr.bf16.mxu0 0
        %1580 = vmatpush2.bf16.msra.mxu0 0
        %1581 = vmatprep.subr.bf16.mxu0 0
        %1582 = vmatpush2.bf16.msra.mxu0 0
        %1583 = vmatprep.subr.bf16.mxu0 0
        %1584 = vmatpush2.bf16.msra.mxu0 0
        %1585 = vmatprep.subr.bf16.mxu0 0
        %1586 = vmatpush2.bf16.msra.mxu0 0
        %1587 = vmatprep.mubr.bf16.mxu0 0
        %1588 = vmatmul.mubr.bf16.gmra.mxu0 %v1468
        %v1589 = vpop.f32.mrf.mxu0
        %v1590 = vadd.f32 %v1505, %v1589
        %v1591 = vpop.f32.mrf.mxu0
        %v1592 = vpop.f32.mrf.mxu0
        %v1593 = vadd.f32 %v1505, %v1592
        %v1594 = vpop.f32.mrf.mxu0
        %1595 = vmatprep.mubr.bf16.mxu0 0
        %1596 = vmatmul.mubr.bf16.gmra.mxu0 %v1469
        %v1597 = vpop.f32.mrf.mxu0
        %v1598 = vadd.f32 %v1505, %v1597
        %v1599 = vpop.f32.mrf.mxu0
        %v1600 = vpop.f32.mrf.mxu0
        %v1601 = vadd.f32 %v1505, %v1600
        %v1602 = vpop.f32.mrf.mxu0
        %1603 = vmatprep.mubr.bf16.mxu0 0
        %1604 = vmatmul.mubr.bf16.gmra.mxu0 %v1470
        %v1605 = vpop.f32.mrf.mxu0
        %v1606 = vadd.f32 %v1505, %v1605
        %v1607 = vpop.f32.mrf.mxu0
        %v1608 = vpop.f32.mrf.mxu0
        %v1609 = vadd.f32 %v1505, %v1608
        %v1610 = vpop.f32.mrf.mxu0
        %1611 = vmatprep.mubr.bf16.mxu0 0
        %1612 = vmatmul.mubr.bf16.gmra.mxu0 %v1471
        %v1613 = vpop.f32.mrf.mxu0
        %v1614 = vadd.f32 %v1505, %v1613
        %v1615 = vpop.f32.mrf.mxu0
        %v1616 = vpop.f32.mrf.mxu0
        %v1617 = vadd.f32 %v1505, %v1616
        %v1618 = vpop.f32.mrf.mxu0
        %1619 = vmatprep.mubr.bf16.mxu0 0
        %1620 = vmatmul.mubr.bf16.gmra.mxu0 %v1472
        %v1621 = vpop.f32.mrf.mxu0
        %v1622 = vadd.f32 %v1505, %v1621
        %v1623 = vpop.f32.mrf.mxu0
        %v1624 = vpop.f32.mrf.mxu0
        %v1625 = vadd.f32 %v1505, %v1624
        %v1626 = vpop.f32.mrf.mxu0
        %1627 = vmatprep.mubr.bf16.mxu0 0
        %1628 = vmatmul.mubr.bf16.gmra.mxu0 %v1473
        %v1629 = vpop.f32.mrf.mxu0
        %v1630 = vadd.f32 %v1505, %v1629
        %v1631 = vpop.f32.mrf.mxu0
        %v1632 = vpop.f32.mrf.mxu0
        %v1633 = vadd.f32 %v1505, %v1632
        %v1634 = vpop.f32.mrf.mxu0
        %1635 = vmatprep.mubr.bf16.mxu0 0
        %1636 = vmatmul.mubr.bf16.gmra.mxu0 %v1474
        %v1637 = vpop.f32.mrf.mxu0
        %v1638 = vadd.f32 %v1505, %v1637
        %v1639 = vpop.f32.mrf.mxu0
        %v1640 = vpop.f32.mrf.mxu0
        %v1641 = vadd.f32 %v1505, %v1640
        %v1642 = vpop.f32.mrf.mxu0
        %1643 = vmatprep.mubr.bf16.mxu0 0
        %1644 = vmatmul.mubr.bf16.gmra.mxu0 %v1475
        %v1645 = vpop.f32.mrf.mxu0
        %v1646 = vadd.f32 %v1505, %v1645
        %v1647 = vpop.f32.mrf.mxu0
        %v1648 = vpop.f32.mrf.mxu0
        %v1649 = vadd.f32 %v1505, %v1648
        %v1650 = vpop.f32.mrf.mxu0
        %1651 = vmatprep.mubr.bf16.mxu0 0
        %1652 = vmatmul.mubr.bf16.gmra.mxu0 %v1476
        %v1653 = vpop.f32.mrf.mxu0
        %v1654 = vadd.f32 %v1505, %v1653
        %v1655 = vpop.f32.mrf.mxu0
        %v1656 = vpop.f32.mrf.mxu0
        %v1657 = vadd.f32 %v1505, %v1656
        %v1658 = vpop.f32.mrf.mxu0
        %1659 = vmatprep.mubr.bf16.mxu0 0
        %1660 = vmatmul.mubr.bf16.gmra.mxu0 %v1477
        %v1661 = vpop.f32.mrf.mxu0
        %v1662 = vadd.f32 %v1505, %v1661
        %v1663 = vpop.f32.mrf.mxu0
        %v1664 = vpop.f32.mrf.mxu0
        %v1665 = vadd.f32 %v1505, %v1664
        %v1666 = vpop.f32.mrf.mxu0
        %1667 = vmatprep.mubr.bf16.mxu0 0
        %1668 = vmatmul.mubr.bf16.gmra.mxu0 %v1478
        %v1669 = vpop.f32.mrf.mxu0
        %v1670 = vadd.f32 %v1505, %v1669
        %v1671 = vpop.f32.mrf.mxu0
        %v1672 = vpop.f32.mrf.mxu0
        %v1673 = vadd.f32 %v1505, %v1672
        %v1674 = vpop.f32.mrf.mxu0
        %1675 = vmatprep.mubr.bf16.mxu0 0
        %1676 = vmatmul.mubr.bf16.gmra.mxu0 %v1479
        %v1677 = vpop.f32.mrf.mxu0
        %v1678 = vadd.f32 %v1505, %v1677
        %v1679 = vpop.f32.mrf.mxu0
        %v1680 = vpop.f32.mrf.mxu0
        %v1681 = vadd.f32 %v1505, %v1680
        %v1682 = vpop.f32.mrf.mxu0
        %1683 = vmatprep.mubr.bf16.mxu0 0
        %1684 = vmatmul.mubr.bf16.gmra.mxu0 %v1480
        %v1685 = vpop.f32.mrf.mxu0
        %v1686 = vadd.f32 %v1505, %v1685
        %v1687 = vpop.f32.mrf.mxu0
        %v1688 = vpop.f32.mrf.mxu0
        %v1689 = vadd.f32 %v1505, %v1688
        %v1690 = vpop.f32.mrf.mxu0
        %1691 = vmatprep.mubr.bf16.mxu0 0
        %1692 = vmatmul.mubr.bf16.gmra.mxu0 %v1481
        %v1693 = vpop.f32.mrf.mxu0
        %v1694 = vadd.f32 %v1505, %v1693
        %v1695 = vpop.f32.mrf.mxu0
        %v1696 = vpop.f32.mrf.mxu0
        %v1697 = vadd.f32 %v1505, %v1696
        %v1698 = vpop.f32.mrf.mxu0
        %1699 = vmatprep.mubr.bf16.mxu0 0
        %1700 = vmatmul.mubr.bf16.gmra.mxu0 %v1482
        %v1701 = vpop.f32.mrf.mxu0
        %v1702 = vadd.f32 %v1505, %v1701
        %v1703 = vpop.f32.mrf.mxu0
        %v1704 = vpop.f32.mrf.mxu0
        %v1705 = vadd.f32 %v1505, %v1704
        %v1706 = vpop.f32.mrf.mxu0
        %1707 = vmatprep.mubr.bf16.mxu0 0
        %1708 = vmatmul.mubr.bf16.gmra.mxu0 %v1483
        %v1709 = vpop.f32.mrf.mxu0
        %v1710 = vadd.f32 %v1505, %v1709
        %v1711 = vpop.f32.mrf.mxu0
        %v1712 = vpop.f32.mrf.mxu0
        %v1713 = vadd.f32 %v1505, %v1712
        %v1714 = vpop.f32.mrf.mxu0
        %1715 = vdwg.mxu0
        %v1716 = vmax.f32 %v1590, 0.0
        %v1717 = vmax.f32 %v1593, 0.0
        %v1718 = vmax.f32 %v1598, 0.0
        %v1719 = vmax.f32 %v1601, 0.0
        %v1720 = vmax.f32 %v1606, 0.0
        %v1721 = vmax.f32 %v1609, 0.0
        %v1722 = vmax.f32 %v1614, 0.0
        %v1723 = vmax.f32 %v1617, 0.0
        %v1724 = vmax.f32 %v1622, 0.0
        %v1725 = vmax.f32 %v1625, 0.0
        %v1726 = vmax.f32 %v1630, 0.0
        %v1727 = vmax.f32 %v1633, 0.0
        %v1728 = vmax.f32 %v1638, 0.0
        %v1729 = vmax.f32 %v1641, 0.0
        %v1730 = vmax.f32 %v1646, 0.0
        %v1731 = vmax.f32 %v1649, 0.0
        %v1732 = vmax.f32 %v1654, 0.0
        %v1733 = vmax.f32 %v1657, 0.0
        %v1734 = vmax.f32 %v1662, 0.0
        %v1735 = vmax.f32 %v1665, 0.0
        %v1736 = vmax.f32 %v1670, 0.0
        %v1737 = vmax.f32 %v1673, 0.0
        %v1738 = vmax.f32 %v1678, 0.0
        %v1739 = vmax.f32 %v1681, 0.0
        %v1740 = vmax.f32 %v1686, 0.0
        %v1741 = vmax.f32 %v1689, 0.0
        %v1742 = vmax.f32 %v1694, 0.0
        %v1743 = vmax.f32 %v1697, 0.0
        %v1744 = vmax.f32 %v1702, 0.0
        %v1745 = vmax.f32 %v1705, 0.0
        %v1746 = vmax.f32 %v1710, 0.0
        %v1747 = vmax.f32 %v1713, 0.0
        %v1748 = vpack.c.bf16 %v1717, %v1716
        %v1749 = vpack.c.bf16 %v1719, %v1718
        %v1750 = vpack.c.bf16 %v1721, %v1720
        %v1751 = vpack.c.bf16 %v1723, %v1722
        %v1752 = vpack.c.bf16 %v1725, %v1724
        %v1753 = vpack.c.bf16 %v1727, %v1726
        %v1754 = vpack.c.bf16 %v1729, %v1728
        %v1755 = vpack.c.bf16 %v1731, %v1730
        %v1756 = vpack.c.bf16 %v1733, %v1732
        %v1757 = vpack.c.bf16 %v1735, %v1734
        %v1758 = vpack.c.bf16 %v1737, %v1736
        %v1759 = vpack.c.bf16 %v1739, %v1738
        %v1760 = vpack.c.bf16 %v1741, %v1740
        %v1761 = vpack.c.bf16 %v1743, %v1742
        %v1762 = vpack.c.bf16 %v1745, %v1744
        %v1763 = vpack.c.bf16 %v1747, %v1746
        %v1764 = vld [vmem:[#allocation10] sm:$0xf]
        %v1765 = vld [vmem:[#allocation10 + $0x4] sm:$0xf]
        %v1766 = vld [vmem:[#allocation10 + $0x8] sm:$0xf]
        %v1767 = vld [vmem:[#allocation10 + $0xc] sm:$0xf]
        %v1768 = vld [vmem:[#allocation10 + $0x10] sm:$0xf]
        %v1769 = vld [vmem:[#allocation10 + $0x14] sm:$0xf]
        %v1770 = vld [vmem:[#allocation10 + $0x18] sm:$0xf]
        %v1771 = vld [vmem:[#allocation10 + $0x1c] sm:$0xf]
        %v1772 = vld [vmem:[#allocation10 + $0x20] sm:$0xf]
        %v1773 = vld [vmem:[#allocation10 + $0x24] sm:$0xf]
        %v1774 = vld [vmem:[#allocation10 + $0x28] sm:$0xf]
        %v1775 = vld [vmem:[#allocation10 + $0x2c] sm:$0xf]
        %v1776 = vld [vmem:[#allocation10 + $0x30] sm:$0xf]
        %v1777 = vld [vmem:[#allocation10 + $0x34] sm:$0xf]
        %v1778 = vld [vmem:[#allocation10 + $0x38] sm:$0xf]
        %v1779 = vld [vmem:[#allocation10 + $0x3c] sm:$0xf]
        %v1780 = vld [vmem:[%s10] sm:$0x1]
        %v1782 = vlaneseq
        %v1783 = vshrl.u32 %v1782, 7
        %v1784 = vsub.s32 0, %v1783
        %v1785 = vrot.slane %v1780, %v1784
        %v1803 = vunpack.c.l.b16 %v1764
        %v1804 = vunpack.c.l.b16 %v1765
        %v1805 = vunpack.c.l.b16 %v1766
        %v1806 = vunpack.c.l.b16 %v1767
        %v1807 = vunpack.c.l.b16 %v1768
        %v1808 = vunpack.c.l.b16 %v1769
        %v1809 = vunpack.c.l.b16 %v1770
        %v1810 = vunpack.c.l.b16 %v1771
        %v1811 = vunpack.c.l.b16 %v1772
        %v1812 = vunpack.c.l.b16 %v1773
        %v1813 = vunpack.c.l.b16 %v1774
        %v1814 = vunpack.c.l.b16 %v1775
        %v1815 = vunpack.c.l.b16 %v1776
        %v1816 = vunpack.c.l.b16 %v1777
        %v1817 = vunpack.c.l.b16 %v1778
        %v1818 = vunpack.c.l.b16 %v1779
        %v1819 = vpack.c.b16 %v1804, %v1803
        %v1820 = vpack.c.b16 %v1806, %v1805
        %v1821 = vpack.c.b16 %v1808, %v1807
        %v1822 = vpack.c.b16 %v1810, %v1809
        %v1823 = vpack.c.b16 %v1812, %v1811
        %v1824 = vpack.c.b16 %v1814, %v1813
        %v1825 = vpack.c.b16 %v1816, %v1815
        %v1826 = vpack.c.b16 %v1818, %v1817
        %1835 = vmatprep.subr.bf16.mxu0 0
        %1836 = vmatpush1.bf16.msra.mxu0 %v1826
        %1837 = vmatprep.subr.bf16.mxu0 0
        %1838 = vmatpush1.bf16.msra.mxu0 %v1825
        %1839 = vmatprep.subr.bf16.mxu0 0
        %1840 = vmatpush1.bf16.msra.mxu0 %v1824
        %1841 = vmatprep.subr.bf16.mxu0 0
        %1842 = vmatpush1.bf16.msra.mxu0 %v1823
        %1843 = vmatprep.subr.bf16.mxu0 0
        %1844 = vmatpush1.bf16.msra.mxu0 %v1822
        %1845 = vmatprep.subr.bf16.mxu0 0
        %1846 = vmatpush1.bf16.msra.mxu0 %v1821
        %1847 = vmatprep.subr.bf16.mxu0 0
        %1848 = vmatpush1.bf16.msra.mxu0 %v1820
        %1849 = vmatprep.subr.bf16.mxu0 0
        %1850 = vmatpush1.bf16.msra.mxu0 %v1819
        %1851 = vmatprep.subr.bf16.mxu0 0
        %1852 = vmatpush2.bf16.msra.mxu0 0
        %1853 = vmatprep.subr.bf16.mxu0 0
        %1854 = vmatpush2.bf16.msra.mxu0 0
        %1855 = vmatprep.subr.bf16.mxu0 0
        %1856 = vmatpush2.bf16.msra.mxu0 0
        %1857 = vmatprep.subr.bf16.mxu0 0
        %1858 = vmatpush2.bf16.msra.mxu0 0
        %1859 = vmatprep.subr.bf16.mxu0 0
        %1860 = vmatpush2.bf16.msra.mxu0 0
        %1861 = vmatprep.subr.bf16.mxu0 0
        %1862 = vmatpush2.bf16.msra.mxu0 0
        %1863 = vmatprep.subr.bf16.mxu0 0
        %1864 = vmatpush2.bf16.msra.mxu0 0
        %1865 = vmatprep.subr.bf16.mxu0 0
        %1866 = vmatpush2.bf16.msra.mxu0 0
        %1867 = vmatprep.mubr.bf16.mxu0 0
        %1868 = vmatmul.mubr.bf16.gmra.mxu0 %v1748
        %v1869 = vpop.f32.mrf.mxu0
        %v1870 = vadd.f32 %v1785, %v1869
        %v1871 = vpop.f32.mrf.mxu0
        %v1872 = vpop.f32.mrf.mxu0
        %v1873 = vadd.f32 %v1785, %v1872
        %v1874 = vpop.f32.mrf.mxu0
        %1875 = vmatprep.mubr.bf16.mxu0 0
        %1876 = vmatmul.mubr.bf16.gmra.mxu0 %v1749
        %v1877 = vpop.f32.mrf.mxu0
        %v1878 = vadd.f32 %v1785, %v1877
        %v1879 = vpop.f32.mrf.mxu0
        %v1880 = vpop.f32.mrf.mxu0
        %v1881 = vadd.f32 %v1785, %v1880
        %v1882 = vpop.f32.mrf.mxu0
        %1883 = vmatprep.mubr.bf16.mxu0 0
        %1884 = vmatmul.mubr.bf16.gmra.mxu0 %v1750
        %v1885 = vpop.f32.mrf.mxu0
        %v1886 = vadd.f32 %v1785, %v1885
        %v1887 = vpop.f32.mrf.mxu0
        %v1888 = vpop.f32.mrf.mxu0
        %v1889 = vadd.f32 %v1785, %v1888
        %v1890 = vpop.f32.mrf.mxu0
        %1891 = vmatprep.mubr.bf16.mxu0 0
        %1892 = vmatmul.mubr.bf16.gmra.mxu0 %v1751
        %v1893 = vpop.f32.mrf.mxu0
        %v1894 = vadd.f32 %v1785, %v1893
        %v1895 = vpop.f32.mrf.mxu0
        %v1896 = vpop.f32.mrf.mxu0
        %v1897 = vadd.f32 %v1785, %v1896
        %v1898 = vpop.f32.mrf.mxu0
        %1899 = vmatprep.mubr.bf16.mxu0 0
        %1900 = vmatmul.mubr.bf16.gmra.mxu0 %v1752
        %v1901 = vpop.f32.mrf.mxu0
        %v1902 = vadd.f32 %v1785, %v1901
        %v1903 = vpop.f32.mrf.mxu0
        %v1904 = vpop.f32.mrf.mxu0
        %v1905 = vadd.f32 %v1785, %v1904
        %v1906 = vpop.f32.mrf.mxu0
        %1907 = vmatprep.mubr.bf16.mxu0 0
        %1908 = vmatmul.mubr.bf16.gmra.mxu0 %v1753
        %v1909 = vpop.f32.mrf.mxu0
        %v1910 = vadd.f32 %v1785, %v1909
        %v1911 = vpop.f32.mrf.mxu0
        %v1912 = vpop.f32.mrf.mxu0
        %v1913 = vadd.f32 %v1785, %v1912
        %v1914 = vpop.f32.mrf.mxu0
        %1915 = vmatprep.mubr.bf16.mxu0 0
        %1916 = vmatmul.mubr.bf16.gmra.mxu0 %v1754
        %v1917 = vpop.f32.mrf.mxu0
        %v1918 = vadd.f32 %v1785, %v1917
        %v1919 = vpop.f32.mrf.mxu0
        %v1920 = vpop.f32.mrf.mxu0
        %v1921 = vadd.f32 %v1785, %v1920
        %v1922 = vpop.f32.mrf.mxu0
        %1923 = vmatprep.mubr.bf16.mxu0 0
        %1924 = vmatmul.mubr.bf16.gmra.mxu0 %v1755
        %v1925 = vpop.f32.mrf.mxu0
        %v1926 = vadd.f32 %v1785, %v1925
        %v1927 = vpop.f32.mrf.mxu0
        %v1928 = vpop.f32.mrf.mxu0
        %v1929 = vadd.f32 %v1785, %v1928
        %v1930 = vpop.f32.mrf.mxu0
        %1931 = vmatprep.mubr.bf16.mxu0 0
        %1932 = vmatmul.mubr.bf16.gmra.mxu0 %v1756
        %v1933 = vpop.f32.mrf.mxu0
        %v1934 = vadd.f32 %v1785, %v1933
        %v1935 = vpop.f32.mrf.mxu0
        %v1936 = vpop.f32.mrf.mxu0
        %v1937 = vadd.f32 %v1785, %v1936
        %v1938 = vpop.f32.mrf.mxu0
        %1939 = vmatprep.mubr.bf16.mxu0 0
        %1940 = vmatmul.mubr.bf16.gmra.mxu0 %v1757
        %v1941 = vpop.f32.mrf.mxu0
        %v1942 = vadd.f32 %v1785, %v1941
        %v1943 = vpop.f32.mrf.mxu0
        %v1944 = vpop.f32.mrf.mxu0
        %v1945 = vadd.f32 %v1785, %v1944
        %v1946 = vpop.f32.mrf.mxu0
        %1947 = vmatprep.mubr.bf16.mxu0 0
        %1948 = vmatmul.mubr.bf16.gmra.mxu0 %v1758
        %v1949 = vpop.f32.mrf.mxu0
        %v1950 = vadd.f32 %v1785, %v1949
        %v1951 = vpop.f32.mrf.mxu0
        %v1952 = vpop.f32.mrf.mxu0
        %v1953 = vadd.f32 %v1785, %v1952
        %v1954 = vpop.f32.mrf.mxu0
        %1955 = vmatprep.mubr.bf16.mxu0 0
        %1956 = vmatmul.mubr.bf16.gmra.mxu0 %v1759
        %v1957 = vpop.f32.mrf.mxu0
        %v1958 = vadd.f32 %v1785, %v1957
        %v1959 = vpop.f32.mrf.mxu0
        %v1960 = vpop.f32.mrf.mxu0
        %v1961 = vadd.f32 %v1785, %v1960
        %v1962 = vpop.f32.mrf.mxu0
        %1963 = vmatprep.mubr.bf16.mxu0 0
        %1964 = vmatmul.mubr.bf16.gmra.mxu0 %v1760
        %v1965 = vpop.f32.mrf.mxu0
        %v1966 = vadd.f32 %v1785, %v1965
        %v1967 = vpop.f32.mrf.mxu0
        %v1968 = vpop.f32.mrf.mxu0
        %v1969 = vadd.f32 %v1785, %v1968
        %v1970 = vpop.f32.mrf.mxu0
        %1971 = vmatprep.mubr.bf16.mxu0 0
        %1972 = vmatmul.mubr.bf16.gmra.mxu0 %v1761
        %v1973 = vpop.f32.mrf.mxu0
        %v1974 = vadd.f32 %v1785, %v1973
        %v1975 = vpop.f32.mrf.mxu0
        %v1976 = vpop.f32.mrf.mxu0
        %v1977 = vadd.f32 %v1785, %v1976
        %v1978 = vpop.f32.mrf.mxu0
        %1979 = vmatprep.mubr.bf16.mxu0 0
        %1980 = vmatmul.mubr.bf16.gmra.mxu0 %v1762
        %v1981 = vpop.f32.mrf.mxu0
        %v1982 = vadd.f32 %v1785, %v1981
        %v1983 = vpop.f32.mrf.mxu0
        %v1984 = vpop.f32.mrf.mxu0
        %v1985 = vadd.f32 %v1785, %v1984
        %v1986 = vpop.f32.mrf.mxu0
        %1987 = vmatprep.mubr.bf16.mxu0 0
        %1988 = vmatmul.mubr.bf16.gmra.mxu0 %v1763
        %v1989 = vpop.f32.mrf.mxu0
        %v1990 = vadd.f32 %v1785, %v1989
        %v1991 = vpop.f32.mrf.mxu0
        %v1992 = vpop.f32.mrf.mxu0
        %v1993 = vadd.f32 %v1785, %v1992
        %v1994 = vpop.f32.mrf.mxu0
        %1995 = vdwg.mxu0
        %1996 = vmax.xlane.f32.xlu0 %v1870
        %v1997 = vpop.xlane.xlu0 %1996
        %1998 = vmax.xlane.f32.xlu0 %v1873
        %v1999 = vpop.xlane.xlu0 %1998
        %2000 = vmax.xlane.f32.xlu0 %v1878
        %v2001 = vpop.xlane.xlu0 %2000
        %2002 = vmax.xlane.f32.xlu0 %v1881
        %v2003 = vpop.xlane.xlu0 %2002
        %2004 = vmax.xlane.f32.xlu0 %v1886
        %v2005 = vpop.xlane.xlu0 %2004
        %2006 = vmax.xlane.f32.xlu0 %v1889
        %v2007 = vpop.xlane.xlu0 %2006
        %2008 = vmax.xlane.f32.xlu0 %v1894
        %v2009 = vpop.xlane.xlu0 %2008
        %2010 = vmax.xlane.f32.xlu0 %v1897
        %v2011 = vpop.xlane.xlu0 %2010
        %2012 = vmax.xlane.f32.xlu0 %v1902
        %v2013 = vpop.xlane.xlu0 %2012
        %2014 = vmax.xlane.f32.xlu0 %v1905
        %v2015 = vpop.xlane.xlu0 %2014
        %2016 = vmax.xlane.f32.xlu0 %v1910
        %v2017 = vpop.xlane.xlu0 %2016
        %2018 = vmax.xlane.f32.xlu0 %v1913
        %v2019 = vpop.xlane.xlu0 %2018
        %2020 = vmax.xlane.f32.xlu0 %v1918
        %v2021 = vpop.xlane.xlu0 %2020
        %2022 = vmax.xlane.f32.xlu0 %v1921
        %v2023 = vpop.xlane.xlu0 %2022
        %2024 = vmax.xlane.f32.xlu0 %v1926
        %v2025 = vpop.xlane.xlu0 %2024
        %2026 = vmax.xlane.f32.xlu0 %v1929
        %v2027 = vpop.xlane.xlu0 %2026
        %2028 = vmax.xlane.f32.xlu0 %v1934
        %v2029 = vpop.xlane.xlu0 %2028
        %2030 = vmax.xlane.f32.xlu0 %v1937
        %v2031 = vpop.xlane.xlu0 %2030
        %2032 = vmax.xlane.f32.xlu0 %v1942
        %v2033 = vpop.xlane.xlu0 %2032
        %2034 = vmax.xlane.f32.xlu0 %v1945
        %v2035 = vpop.xlane.xlu0 %2034
        %2036 = vmax.xlane.f32.xlu0 %v1950
        %v2037 = vpop.xlane.xlu0 %2036
        %2038 = vmax.xlane.f32.xlu0 %v1953
        %v2039 = vpop.xlane.xlu0 %2038
        %2040 = vmax.xlane.f32.xlu0 %v1958
        %v2041 = vpop.xlane.xlu0 %2040
        %2042 = vmax.xlane.f32.xlu0 %v1961
        %v2043 = vpop.xlane.xlu0 %2042
        %2044 = vmax.xlane.f32.xlu0 %v1966
        %v2045 = vpop.xlane.xlu0 %2044
        %2046 = vmax.xlane.f32.xlu0 %v1969
        %v2047 = vpop.xlane.xlu0 %2046
        %2048 = vmax.xlane.f32.xlu0 %v1974
        %v2049 = vpop.xlane.xlu0 %2048
        %2050 = vmax.xlane.f32.xlu0 %v1977
        %v2051 = vpop.xlane.xlu0 %2050
        %2052 = vmax.xlane.f32.xlu0 %v1982
        %v2053 = vpop.xlane.xlu0 %2052
        %2054 = vmax.xlane.f32.xlu0 %v1985
        %v2055 = vpop.xlane.xlu0 %2054
        %2056 = vmax.xlane.f32.xlu0 %v1990
        %v2057 = vpop.xlane.xlu0 %2056
        %2058 = vmax.xlane.f32.xlu0 %v1993
        %v2059 = vpop.xlane.xlu0 %2058
        %v2060 = vsub.f32 %v1870, %v1997
        %v2061 = vsub.f32 %v1873, %v1999
        %v2062 = vsub.f32 %v1878, %v2001
        %v2063 = vsub.f32 %v1881, %v2003
        %v2064 = vsub.f32 %v1886, %v2005
        %v2065 = vsub.f32 %v1889, %v2007
        %v2066 = vsub.f32 %v1894, %v2009
        %v2067 = vsub.f32 %v1897, %v2011
        %v2068 = vsub.f32 %v1902, %v2013
        %v2069 = vsub.f32 %v1905, %v2015
        %v2070 = vsub.f32 %v1910, %v2017
        %v2071 = vsub.f32 %v1913, %v2019
        %v2072 = vsub.f32 %v1918, %v2021
        %v2073 = vsub.f32 %v1921, %v2023
        %v2074 = vsub.f32 %v1926, %v2025
        %v2075 = vsub.f32 %v1929, %v2027
        %v2076 = vsub.f32 %v1934, %v2029
        %v2077 = vsub.f32 %v1937, %v2031
        %v2078 = vsub.f32 %v1942, %v2033
        %v2079 = vsub.f32 %v1945, %v2035
        %v2080 = vsub.f32 %v1950, %v2037
        %v2081 = vsub.f32 %v1953, %v2039
        %v2082 = vsub.f32 %v1958, %v2041
        %v2083 = vsub.f32 %v1961, %v2043
        %v2084 = vsub.f32 %v1966, %v2045
        %v2085 = vsub.f32 %v1969, %v2047
        %v2086 = vsub.f32 %v1974, %v2049
        %v2087 = vsub.f32 %v1977, %v2051
        %v2088 = vsub.f32 %v1982, %v2053
        %v2089 = vsub.f32 %v1985, %v2055
        %v2090 = vsub.f32 %v1990, %v2057
        %v2091 = vsub.f32 %v1993, %v2059
        %v2092 = vmul.f32 %v2060, 1.442695
        %v2093 = vpow.pop %v2092
        %v2094 = vmul.f32 %v2061, 1.442695
        %v2095 = vpow.pop %v2094
        %v2096 = vmul.f32 %v2062, 1.442695
        %v2097 = vpow.pop %v2096
        %v2098 = vmul.f32 %v2063, 1.442695
        %v2099 = vpow.pop %v2098
        %v2100 = vmul.f32 %v2064, 1.442695
        %v2101 = vpow.pop %v2100
        %v2102 = vmul.f32 %v2065, 1.442695
        %v2103 = vpow.pop %v2102
        %v2104 = vmul.f32 %v2066, 1.442695
        %v2105 = vpow.pop %v2104
        %v2106 = vmul.f32 %v2067, 1.442695
        %v2107 = vpow.pop %v2106
        %v2108 = vmul.f32 %v2068, 1.442695
        %v2109 = vpow.pop %v2108
        %v2110 = vmul.f32 %v2069, 1.442695
        %v2111 = vpow.pop %v2110
        %v2112 = vmul.f32 %v2070, 1.442695
        %v2113 = vpow.pop %v2112
        %v2114 = vmul.f32 %v2071, 1.442695
        %v2115 = vpow.pop %v2114
        %v2116 = vmul.f32 %v2072, 1.442695
        %v2117 = vpow.pop %v2116
        %v2118 = vmul.f32 %v2073, 1.442695
        %v2119 = vpow.pop %v2118
        %v2120 = vmul.f32 %v2074, 1.442695
        %v2121 = vpow.pop %v2120
        %v2122 = vmul.f32 %v2075, 1.442695
        %v2123 = vpow.pop %v2122
        %v2124 = vmul.f32 %v2076, 1.442695
        %v2125 = vpow.pop %v2124
        %v2126 = vmul.f32 %v2077, 1.442695
        %v2127 = vpow.pop %v2126
        %v2128 = vmul.f32 %v2078, 1.442695
        %v2129 = vpow.pop %v2128
        %v2130 = vmul.f32 %v2079, 1.442695
        %v2131 = vpow.pop %v2130
        %v2132 = vmul.f32 %v2080, 1.442695
        %v2133 = vpow.pop %v2132
        %v2134 = vmul.f32 %v2081, 1.442695
        %v2135 = vpow.pop %v2134
        %v2136 = vmul.f32 %v2082, 1.442695
        %v2137 = vpow.pop %v2136
        %v2138 = vmul.f32 %v2083, 1.442695
        %v2139 = vpow.pop %v2138
        %v2140 = vmul.f32 %v2084, 1.442695
        %v2141 = vpow.pop %v2140
        %v2142 = vmul.f32 %v2085, 1.442695
        %v2143 = vpow.pop %v2142
        %v2144 = vmul.f32 %v2086, 1.442695
        %v2145 = vpow.pop %v2144
        %v2146 = vmul.f32 %v2087, 1.442695
        %v2147 = vpow.pop %v2146
        %v2148 = vmul.f32 %v2088, 1.442695
        %v2149 = vpow.pop %v2148
        %v2150 = vmul.f32 %v2089, 1.442695
        %v2151 = vpow.pop %v2150
        %v2152 = vmul.f32 %v2090, 1.442695
        %v2153 = vpow.pop %v2152
        %v2154 = vmul.f32 %v2091, 1.442695
        %v2155 = vpow.pop %v2154
        %2156 = vadd.xlane.f32.xlu0 %v2093
        %v2157 = vpop.xlane.xlu0 %2156
        %2158 = vadd.xlane.f32.xlu0 %v2095
        %v2159 = vpop.xlane.xlu0 %2158
        %2160 = vadd.xlane.f32.xlu0 %v2097
        %v2161 = vpop.xlane.xlu0 %2160
        %2162 = vadd.xlane.f32.xlu0 %v2099
        %v2163 = vpop.xlane.xlu0 %2162
        %2164 = vadd.xlane.f32.xlu0 %v2101
        %v2165 = vpop.xlane.xlu0 %2164
        %2166 = vadd.xlane.f32.xlu0 %v2103
        %v2167 = vpop.xlane.xlu0 %2166
        %2168 = vadd.xlane.f32.xlu0 %v2105
        %v2169 = vpop.xlane.xlu0 %2168
        %2170 = vadd.xlane.f32.xlu0 %v2107
        %v2171 = vpop.xlane.xlu0 %2170
        %2172 = vadd.xlane.f32.xlu0 %v2109
        %v2173 = vpop.xlane.xlu0 %2172
        %2174 = vadd.xlane.f32.xlu0 %v2111
        %v2175 = vpop.xlane.xlu0 %2174
        %2176 = vadd.xlane.f32.xlu0 %v2113
        %v2177 = vpop.xlane.xlu0 %2176
        %2178 = vadd.xlane.f32.xlu0 %v2115
        %v2179 = vpop.xlane.xlu0 %2178
        %2180 = vadd.xlane.f32.xlu0 %v2117
        %v2181 = vpop.xlane.xlu0 %2180
        %2182 = vadd.xlane.f32.xlu0 %v2119
        %v2183 = vpop.xlane.xlu0 %2182
        %2184 = vadd.xlane.f32.xlu0 %v2121
        %v2185 = vpop.xlane.xlu0 %2184
        %2186 = vadd.xlane.f32.xlu0 %v2123
        %v2187 = vpop.xlane.xlu0 %2186
        %2188 = vadd.xlane.f32.xlu0 %v2125
        %v2189 = vpop.xlane.xlu0 %2188
        %2190 = vadd.xlane.f32.xlu0 %v2127
        %v2191 = vpop.xlane.xlu0 %2190
        %2192 = vadd.xlane.f32.xlu0 %v2129
        %v2193 = vpop.xlane.xlu0 %2192
        %2194 = vadd.xlane.f32.xlu0 %v2131
        %v2195 = vpop.xlane.xlu0 %2194
        %2196 = vadd.xlane.f32.xlu0 %v2133
        %v2197 = vpop.xlane.xlu0 %2196
        %2198 = vadd.xlane.f32.xlu0 %v2135
        %v2199 = vpop.xlane.xlu0 %2198
        %2200 = vadd.xlane.f32.xlu0 %v2137
        %v2201 = vpop.xlane.xlu0 %2200
        %2202 = vadd.xlane.f32.xlu0 %v2139
        %v2203 = vpop.xlane.xlu0 %2202
        %2204 = vadd.xlane.f32.xlu0 %v2141
        %v2205 = vpop.xlane.xlu0 %2204
        %2206 = vadd.xlane.f32.xlu0 %v2143
        %v2207 = vpop.xlane.xlu0 %2206
        %2208 = vadd.xlane.f32.xlu0 %v2145
        %v2209 = vpop.xlane.xlu0 %2208
        %2210 = vadd.xlane.f32.xlu0 %v2147
        %v2211 = vpop.xlane.xlu0 %2210
        %2212 = vadd.xlane.f32.xlu0 %v2149
        %v2213 = vpop.xlane.xlu0 %2212
        %2214 = vadd.xlane.f32.xlu0 %v2151
        %v2215 = vpop.xlane.xlu0 %2214
        %2216 = vadd.xlane.f32.xlu0 %v2153
        %v2217 = vpop.xlane.xlu0 %2216
        %2218 = vadd.xlane.f32.xlu0 %v2155
        %v2219 = vpop.xlane.xlu0 %2218
        %v2220 = vlog2.pop %v2157
        %v2221 = vmul.f32 %v2220, 0.6931472
        %v2222 = vlog2.pop %v2159
        %v2223 = vmul.f32 %v2222, 0.6931472
        %v2224 = vlog2.pop %v2161
        %v2225 = vmul.f32 %v2224, 0.6931472
        %v2226 = vlog2.pop %v2163
        %v2227 = vmul.f32 %v2226, 0.6931472
        %v2228 = vlog2.pop %v2165
        %v2229 = vmul.f32 %v2228, 0.6931472
        %v2230 = vlog2.pop %v2167
        %v2231 = vmul.f32 %v2230, 0.6931472
        %v2232 = vlog2.pop %v2169
        %v2233 = vmul.f32 %v2232, 0.6931472
        %v2234 = vlog2.pop %v2171
        %v2235 = vmul.f32 %v2234, 0.6931472
        %v2236 = vlog2.pop %v2173
        %v2237 = vmul.f32 %v2236, 0.6931472
        %v2238 = vlog2.pop %v2175
        %v2239 = vmul.f32 %v2238, 0.6931472
        %v2240 = vlog2.pop %v2177
        %v2241 = vmul.f32 %v2240, 0.6931472
        %v2242 = vlog2.pop %v2179
        %v2243 = vmul.f32 %v2242, 0.6931472
        %v2244 = vlog2.pop %v2181
        %v2245 = vmul.f32 %v2244, 0.6931472
        %v2246 = vlog2.pop %v2183
        %v2247 = vmul.f32 %v2246, 0.6931472
        %v2248 = vlog2.pop %v2185
        %v2249 = vmul.f32 %v2248, 0.6931472
        %v2250 = vlog2.pop %v2187
        %v2251 = vmul.f32 %v2250, 0.6931472
        %v2252 = vlog2.pop %v2189
        %v2253 = vmul.f32 %v2252, 0.6931472
        %v2254 = vlog2.pop %v2191
        %v2255 = vmul.f32 %v2254, 0.6931472
        %v2256 = vlog2.pop %v2193
        %v2257 = vmul.f32 %v2256, 0.6931472
        %v2258 = vlog2.pop %v2195
        %v2259 = vmul.f32 %v2258, 0.6931472
        %v2260 = vlog2.pop %v2197
        %v2261 = vmul.f32 %v2260, 0.6931472
        %v2262 = vlog2.pop %v2199
        %v2263 = vmul.f32 %v2262, 0.6931472
        %v2264 = vlog2.pop %v2201
        %v2265 = vmul.f32 %v2264, 0.6931472
        %v2266 = vlog2.pop %v2203
        %v2267 = vmul.f32 %v2266, 0.6931472
        %v2268 = vlog2.pop %v2205
        %v2269 = vmul.f32 %v2268, 0.6931472
        %v2270 = vlog2.pop %v2207
        %v2271 = vmul.f32 %v2270, 0.6931472
        %v2272 = vlog2.pop %v2209
        %v2273 = vmul.f32 %v2272, 0.6931472
        %v2274 = vlog2.pop %v2211
        %v2275 = vmul.f32 %v2274, 0.6931472
        %v2276 = vlog2.pop %v2213
        %v2277 = vmul.f32 %v2276, 0.6931472
        %v2278 = vlog2.pop %v2215
        %v2279 = vmul.f32 %v2278, 0.6931472
        %v2280 = vlog2.pop %v2217
        %v2281 = vmul.f32 %v2280, 0.6931472
        %v2282 = vlog2.pop %v2219
        %v2283 = vmul.f32 %v2282, 0.6931472
        %v2284 = vsub.f32 %v2060, %v2221
        %v2285 = vsub.f32 %v2061, %v2223
        %v2286 = vsub.f32 %v2062, %v2225
        %v2287 = vsub.f32 %v2063, %v2227
        %v2288 = vsub.f32 %v2064, %v2229
        %v2289 = vsub.f32 %v2065, %v2231
        %v2290 = vsub.f32 %v2066, %v2233
        %v2291 = vsub.f32 %v2067, %v2235
        %v2292 = vsub.f32 %v2068, %v2237
        %v2293 = vsub.f32 %v2069, %v2239
        %v2294 = vsub.f32 %v2070, %v2241
        %v2295 = vsub.f32 %v2071, %v2243
        %v2296 = vsub.f32 %v2072, %v2245
        %v2297 = vsub.f32 %v2073, %v2247
        %v2298 = vsub.f32 %v2074, %v2249
        %v2299 = vsub.f32 %v2075, %v2251
        %v2300 = vsub.f32 %v2076, %v2253
        %v2301 = vsub.f32 %v2077, %v2255
        %v2302 = vsub.f32 %v2078, %v2257
        %v2303 = vsub.f32 %v2079, %v2259
        %v2304 = vsub.f32 %v2080, %v2261
        %v2305 = vsub.f32 %v2081, %v2263
        %v2306 = vsub.f32 %v2082, %v2265
        %v2307 = vsub.f32 %v2083, %v2267
        %v2308 = vsub.f32 %v2084, %v2269
        %v2309 = vsub.f32 %v2085, %v2271
        %v2310 = vsub.f32 %v2086, %v2273
        %v2311 = vsub.f32 %v2087, %v2275
        %v2312 = vsub.f32 %v2088, %v2277
        %v2313 = vsub.f32 %v2089, %v2279
        %v2314 = vsub.f32 %v2090, %v2281
        %v2315 = vsub.f32 %v2091, %v2283
        %2316 = vst [vmem:[%s481] sm:$0xff] %v2284
        %2317 = vst [vmem:[%s481 + $0x8] sm:$0xff] %v2285
        %2318 = vst [vmem:[%s481 + $0x10] sm:$0xff] %v2286
        %2319 = vst [vmem:[%s481 + $0x18] sm:$0xff] %v2287
        %2320 = vst [vmem:[%s481 + $0x20] sm:$0xff] %v2288
        %2321 = vst [vmem:[%s481 + $0x28] sm:$0xff] %v2289
        %2322 = vst [vmem:[%s481 + $0x30] sm:$0xff] %v2290
        %2323 = vst [vmem:[%s481 + $0x38] sm:$0xff] %v2291
        %2324 = vst [vmem:[%s481 + $0x40] sm:$0xff] %v2292
        %2325 = vst [vmem:[%s481 + $0x48] sm:$0xff] %v2293
        %2326 = vst [vmem:[%s481 + $0x50] sm:$0xff] %v2294
        %2327 = vst [vmem:[%s481 + $0x58] sm:$0xff] %v2295
        %2328 = vst [vmem:[%s481 + $0x60] sm:$0xff] %v2296
        %2329 = vst [vmem:[%s481 + $0x68] sm:$0xff] %v2297
        %2330 = vst [vmem:[%s481 + $0x70] sm:$0xff] %v2298
        %2331 = vst [vmem:[%s481 + $0x78] sm:$0xff] %v2299
        %2332 = vst [vmem:[%s481 + $0x80] sm:$0xff] %v2300
        %2333 = vst [vmem:[%s481 + $0x88] sm:$0xff] %v2301
        %2334 = vst [vmem:[%s481 + $0x90] sm:$0xff] %v2302
        %2335 = vst [vmem:[%s481 + $0x98] sm:$0xff] %v2303
        %2336 = vst [vmem:[%s481 + $0xa0] sm:$0xff] %v2304
        %2337 = vst [vmem:[%s481 + $0xa8] sm:$0xff] %v2305
        %2338 = vst [vmem:[%s481 + $0xb0] sm:$0xff] %v2306
        %2339 = vst [vmem:[%s481 + $0xb8] sm:$0xff] %v2307
        %2340 = vst [vmem:[%s481 + $0xc0] sm:$0xff] %v2308
        %2341 = vst [vmem:[%s481 + $0xc8] sm:$0xff] %v2309
        %2342 = vst [vmem:[%s481 + $0xd0] sm:$0xff] %v2310
        %2343 = vst [vmem:[%s481 + $0xd8] sm:$0xff] %v2311
        %2344 = vst [vmem:[%s481 + $0xe0] sm:$0xff] %v2312
        %2345 = vst [vmem:[%s481 + $0xe8] sm:$0xff] %v2313
        %2346 = vst [vmem:[%s481 + $0xf0] sm:$0xff] %v2314
        %2347 = vst [vmem:[%s481 + $0xf8] sm:$0xff] %v2315
        %s2348 = smul.u32 32, %s28
        %p2349 = scmp.lt.s32.totalorder %s2348, 63
        %s2350 = scalar_select %p2349, %s2348, 63
        %s2351 = smul.addr %s2350, 8
        %s2352 = scalar_lea.vmem %s11, %s2351
        // Predicated region
        $region89: #{advanced_net_forward.1} parent=63 // pred_check
          %p2353 = pneg %p282
        $region90: #{advanced_net_forward.1} parent=63 // pred_check_branch
          %2355 = sbr.rel (%p2353) target = $region92
        $region91: #{advanced_net_forward.1} parent=63 // pred_region
          %s2356 = smul.u32 32, %s28
        $region92: #{advanced_net_forward.1} parent=63 // pred_fallthru
          _
      $region64: #{advanced_net_forward.1} parent=5 // pred_fallthru
        _
      %p2357 = scmp.le.s32.totalorder 2, %s23
      // Predicated region
      $region93: #{advanced_net_forward.1} parent=5 // pred_check
        %p2358 = pneg %p2357
      $region94: #{advanced_net_forward.1} parent=5 // pred_check_branch
        %2360 = sbr.rel (%p2358) target = $region96
      $region95: #{advanced_net_forward.1} parent=5 // pred_region
        %s2361 = ssub.s32 %s23, 2
        // Predicated region
        $region97: #{advanced_net_forward.1} parent=95 // pred_check
          %p2362 = pneg %p288
        $region98: #{advanced_net_forward.1} parent=95 // pred_check_branch
          %2364 = sbr.rel (%p2362) target = $region100
        $region99: #{advanced_net_forward.1} parent=95 // pred_region
          %s2365 = smul.u32 32, %s29
          %p2366 = scmp.lt.s32.totalorder %s2365, 63
          %s2367 = scalar_select %p2366, %s2365, 63
          %s2368 = smul.addr %s2367, 8
          %s2369 = scalar_lea.vmem %s11, %s2368
        $region100: #{advanced_net_forward.1} parent=95 // pred_fallthru
          _
      $region96: #{advanced_net_forward.1} parent=5 // pred_fallthru
        _
    $region6: #{advanced_net_forward.1} parent=1 // loop_footer
      %s27 = sadd.s32 1, %s23
    $region7: #{advanced_net_forward.1} parent=1 // loop_footer_branch
      %22 = sbr.rel target = $region3
    $region8: #{advanced_net_forward.1} parent=1 // loop_exit
      _
    %2370 = vsyncpa [#allocation3], 1
    %s2371 = scalar_lea.sflag [#allocation3], 1
    %2372 = vsyncpa %s2371, 1
    %2373 = vsyncpa [#allocation5], 1
    %2374 = vsyncpa [#allocation8], 1
    %2375 = vsyncpa [#allocation11], 1

</llo_original>
